<compile_context>
chip_gen: v6e
topology: v6e:2x2x1
jax: 0.10.0
libtpu: 0.0.40
codegen_flags: <defaults>
</compile_context>

<pallas_src>
import functools

import jax
import jax.numpy as jnp
from jax.experimental import pallas as pl
from jax.experimental.pallas import tpu as pltpu


def _attention_kernel(x_ref, enc_ref, wqkv_ref, bqkv_ref, wp_ref, bp_ref, o_ref,
                      *, fuse_q):
    Bt, Tq, nx = x_ref.shape
    _, Tk, _ = enc_ref.shape
    cdt = x_ref.dtype                    # compute dtype for MXU operands
    exact = (cdt == jnp.float32)         # trace-time branch (high-precision path)

    x2 = x_ref[...].reshape(Bt * Tq, nx)
    e2 = enc_ref[...].reshape(Bt * Tk, nx)

    if fuse_q:
        # One stacked projection: [x; enc] @ [wq | wk | wv].  Single MXU weight
        # push with M = Bt*(Tq+Tk); the unused quadrants (x@wk|wv, enc@wq) are
        # cheap because this matmul is weight-push/latency bound at small Tq.
        xe = jnp.concatenate([x2, e2], axis=0)
        qkv = jnp.dot(xe, wqkv_ref[...],
                      preferred_element_type=jnp.float32) + bqkv_ref[...]
        q = qkv[:Bt * Tq, :nx]
        kv = qkv[Bt * Tq:, nx:]
    else:
        # Separate Q projection; K and V stay fused into one (nx, 2*nx) matmul.
        q = jnp.dot(x2, wqkv_ref[:, :nx],
                    preferred_element_type=jnp.float32) + bqkv_ref[:, :nx]
        kv = jnp.dot(e2, wqkv_ref[:, nx:],
                     preferred_element_type=jnp.float32) + bqkv_ref[:, nx:]

    q3 = q.reshape(Bt, Tq, nx).astype(cdt)
    k3 = kv[:, :nx].reshape(Bt, Tk, nx).astype(cdt)
    v3 = kv[:, nx:].reshape(Bt, Tk, nx).astype(cdt)

    # ---- w = Q @ K  (NO transpose of K: matches the reference; needs Tk == nx)
    w = jnp.einsum('bic,bcj->bij', q3, k3, preferred_element_type=jnp.float32)
    # scale=False in the reference default -> no / sqrt(d)

    # ---- numerically stable softmax, kept in f32 ----
    w = w - jnp.max(w, axis=-1, keepdims=True)
    p = jnp.exp(w)
    denom = jnp.sum(p, axis=-1, keepdims=True)
    if exact:
        p = p / denom
    else:
        # ~2^-12 relative error; intentional trade-off on the bf16 fast path (EUP slot).
        p = p * pl.reciprocal(denom, approx=True)

    # ---- a = softmax(w) @ V ----
    a = jnp.einsum('bij,bjd->bid', p.astype(cdt), v3,
                   preferred_element_type=jnp.float32)

    # ---- merge_heads is a no-op for n_head == 1; output projection ----
    a2 = a.reshape(Bt * Tq, nx).astype(cdt)
    out = jnp.dot(a2, wp_ref[...], preferred_element_type=jnp.float32) + bp_ref[...]
    o_ref[...] = out.reshape(Bt, Tq, nx).astype(o_ref.dtype)


def _choose_block_b(B, Tq, Tk, *, min_rows=256, target_rows=1024):
    """Pick a batch block Bt (dividing B).

    The per-step flattened matmul height is M = Bt*(Tq+Tk).  Tiny problems get
    a single grid step (no pipeline / megacore overhead); large batches are
    split so each step keeps M near `target_rows` (good MXU feeding, bounded
    VMEM) and never below `min_rows` (avoid weight-push-bound matmuls).
    """
    rows_per_b = Tq + Tk
    if B * rows_per_b <= 2 * min_rows:
        return B                                      # one grid step
    divisors = [d for d in range(1, B + 1) if B % d == 0]
    good = [d for d in divisors if d < B and d * rows_per_b <= target_rows]
    if not good:
        # either a single batch element already exceeds target_rows (split per
        # batch element), or B is prime/awkward (run it as one big step).
        return 1 if rows_per_b >= min_rows else B
    bt = max(good)
    if bt * rows_per_b < min_rows:
        bigger = [d for d in divisors if d * rows_per_b >= min_rows]
        bt = min(bigger) if bigger else B
    return bt


def attention_pallas(x, enc, params, *, compute_dtype=jnp.bfloat16,
                     out_dtype=None, block_b=None):
    """x: (B, Tq, nx), enc: (B, Tk, nx) with Tk == nx (required by the reference math)."""
    B, Tq, nx = x.shape
    Be, Tk, nxe = enc.shape
    assert Be == B and nxe == nx
    assert Tk == nx, "reference Attention_ is only shape-consistent when T_k == nx"

    wq, bq, wk, bk, wv, bv, wp, bp = params
    out_dtype = x.dtype if out_dtype is None else out_dtype

    # Fuse Q|K|V projection weights into one (nx, 3*nx) matrix; cast matmul
    # operands to the compute dtype (bf16 by default).  Biases stay f32.
    w_qkv = jnp.concatenate([wq, wk, wv], axis=1).astype(compute_dtype)
    b_qkv = jnp.concatenate([bq, bk, bv], axis=1).astype(jnp.float32)
    wp_c = wp.astype(compute_dtype)
    bp_c = bp.astype(jnp.float32)
    x_c = x.astype(compute_dtype)
    enc_c = enc.astype(compute_dtype)

    bt = block_b if block_b is not None else _choose_block_b(B, Tq, Tk)
    assert B % bt == 0, "batch block must divide B"
    grid = (B // bt,)

    # Stack Q into the projection matmul only when Q alone would be push-bound
    # (tiny Tq); otherwise the extra FLOPs of the stacked form are real.
    fuse_q = (bt * Tq < 128) or (2 * Tq <= Tk)

    cbytes = jnp.dtype(compute_dtype).itemsize
    obytes = jnp.dtype(out_dtype).itemsize

    # ---- advisory cost estimate (lets XLA overlap the host-side concats/casts)
    if fuse_q:
        proj_flops = 2 * B * (Tq + Tk) * nx * (3 * nx)
    else:
        proj_flops = 2 * B * Tq * nx * nx + 2 * B * Tk * nx * (2 * nx)
    attn_flops = 4 * B * Tq * Tk * nx            # Q@K and P@V
    out_flops = 2 * B * Tq * nx * nx
    bytes_accessed = (B * (Tq + Tk) * nx * cbytes          # x, enc
                      + (4 * nx * nx + 4 * nx) * cbytes    # weights + biases
                      + B * Tq * nx * obytes)              # output
    cost = pl.CostEstimate(flops=int(proj_flops + attn_flops + out_flops),
                           transcendentals=int(B * Tq * Tk),
                           bytes_accessed=int(bytes_accessed))

    # ---- explicit VMEM budget with headroom (defaults are only 16/32 MiB scoped)
    act_bytes = 2 * 2 * bt * (Tq + Tk) * nx * cbytes        # double-buffered x + enc
    out_bytes = 2 * bt * Tq * nx * obytes
    wt_bytes = (3 * nx * nx + nx * nx + 4 * nx) * cbytes
    inter_bytes = 4 * (bt * (Tq + Tk) * 3 * nx + 2 * bt * Tq * Tk + bt * Tq * nx)
    vmem_limit = int(min(56 * 2**20,
                         max(32 * 2**20,
                             2 * (act_bytes + out_bytes + wt_bytes + inter_bytes))))

    seq_spec = lambda T: pl.BlockSpec((bt, T, nx), lambda b: (b, 0, 0))

    def const_spec(shape, single_buffer):
        idx = lambda b: (0,) * len(shape)
        if single_buffer:
            # constant block index -> no need to double-buffer the weights.
            return pl.BlockSpec(shape, idx, pipeline_mode=pl.Buffered(1))
        return pl.BlockSpec(shape, idx)

    def call(single_buffer_weights):
        wspec = lambda s: const_spec(s, single_buffer_weights)
        return pl.pallas_call(
            functools.partial(_attention_kernel, fuse_q=fuse_q),
            out_shape=jax.ShapeDtypeStruct((B, Tq, nx), out_dtype),
            grid_spec=pltpu.PrefetchScalarGridSpec(
                num_scalar_prefetch=0,
                grid=grid,
                in_specs=[
                    seq_spec(Tq),                   # x
                    seq_spec(Tk),                   # enc
                    wspec((nx, 3 * nx)),            # wq | wk | wv
                    wspec((1, 3 * nx)),             # bq | bk | bv
                    wspec((nx, nx)),                # c_proj weight
                    wspec((1, nx)),                 # c_proj bias
                ],
                out_specs=seq_spec(Tq),
            ),
            compiler_params=pltpu.CompilerParams(
                dimension_semantics=("parallel",),
                vmem_limit_bytes=vmem_limit),
            cost_estimate=cost,
        )(x_c, enc_c, w_qkv, b_qkv, wp_c, bp_c)

    try:
        return call(True)
    except Exception:
        # TODO(synk): this jax build rejected pipeline_mode=pl.Buffered(1);
        # fall back to default double-buffered weight blocks.
        return call(False)


def init_params(key, nx):
    """Deterministic parameter init matching Conv1D.__init__ (normal std=0.02, zero bias)."""
    ks = jax.random.split(key, 4)

    def conv1d(k):
        w = 0.02 * jax.random.normal(k, (nx, nx), dtype=jnp.float32)
        b = jnp.zeros((1, nx), dtype=jnp.float32)   # kept 2D for TPU-friendly layout
        return w, b

    wq, bq = conv1d(ks[0])
    wk, bk = conv1d(ks[1])
    wv, bv = conv1d(ks[2])
    wp, bp = conv1d(ks[3])
    return (wq, bq, wk, bk, wv, bv, wp, bp)


def attention_ref(x, enc, params):
    """Pure-JAX reference mirroring the PyTorch forward (n_head=1, scale=False)."""
    wq, bq, wk, bk, wv, bv, wp, bp = params
    hp = jax.lax.Precision.HIGHEST
    q = jnp.einsum('btc,cf->btf', x, wq, precision=hp) + bq
    k = jnp.einsum('btc,cf->btf', enc, wk, precision=hp) + bk
    v = jnp.einsum('btc,cf->btf', enc, wv, precision=hp) + bv
    w = jnp.einsum('bic,bcj->bij', q, k, precision=hp)   # no transpose, as in the reference
    w = jax.nn.softmax(w, axis=-1)
    a = jnp.einsum('bij,bjd->bid', w, v, precision=hp)
    return jnp.einsum('btc,cf->btf', a, wp, precision=hp) + bp


if __name__ == "__main__":
    # Small shapes consistent with the module: n_head = 1 and T_k must equal nx.
    # nx = 128 keeps the feature dim lane-dense (multiple of 128 lanes) on TPU.
    B, Tq, nx = 2, 8, 128
    Tk = nx

    key = jax.random.PRNGKey(0)
    kx, kenc, kp = jax.random.split(key, 3)
    x = jax.random.normal(kx, (B, Tq, nx), dtype=jnp.float32)
    enc = jax.random.normal(kenc, (B, Tk, nx), dtype=jnp.float32)
    params = init_params(kp, nx)

    ref = attention_ref(x, enc, params)

    # High-precision path (f32 MXU operands): tight semantics check.
    out_f32 = jax.block_until_ready(
        attention_pallas(x, enc, params, compute_dtype=jnp.float32))
    assert out_f32.shape == (B, Tq, nx)
    assert jnp.allclose(out_f32, ref, atol=2e-5, rtol=2e-5), "f32 path mismatch vs reference"

    # Fast path (bf16 MXU operands, f32 accumulation / f32 softmax).
    out = jax.block_until_ready(attention_pallas(x, enc, params))
    assert out.shape == (B, Tq, nx)
    assert jnp.allclose(out, ref, atol=3e-3, rtol=5e-2), "bf16 path mismatch vs reference"

    print("KERNEL_OK")
</pallas_src>

<mosaic_0001>
module attributes {stable_mosaic.version = 11 : i64} {
  func.func @_attention_kernel(%arg0: i32, %arg1: memref<2x8x128xf32, #tpu.memory_space<vmem>>, %arg2: memref<2x128x128xf32, #tpu.memory_space<vmem>>, %arg3: memref<128x384xf32, #tpu.memory_space<vmem>>, %arg4: memref<1x384xf32, #tpu.memory_space<vmem>>, %arg5: memref<128x128xf32, #tpu.memory_space<vmem>>, %arg6: memref<1x128xf32, #tpu.memory_space<vmem>>, %arg7: memref<2x8x128xf32, #tpu.memory_space<vmem>>) attributes {dimension_semantics = [#tpu.dimension_semantics<parallel>], iteration_bounds = array<i64: 1>, scalar_prefetch = 0 : i64, scratch_operands = 0 : i64, tpu.core_type = #tpu.core_type<tc>, window_params = [{transform_indices = @transform_0, window_bounds = array<i64: 2, 8, 128>}, {transform_indices = @transform_1, window_bounds = array<i64: 2, 128, 128>}, {pipeline_mode = #tpu.pipeline_mode<synchronous>, transform_indices = @transform_2, window_bounds = array<i64: 128, 384>}, {pipeline_mode = #tpu.pipeline_mode<synchronous>, transform_indices = @transform_3, window_bounds = array<i64: 1, 384>}, {pipeline_mode = #tpu.pipeline_mode<synchronous>, transform_indices = @transform_4, window_bounds = array<i64: 128, 128>}, {pipeline_mode = #tpu.pipeline_mode<synchronous>, transform_indices = @transform_5, window_bounds = array<i64: 1, 128>}, {transform_indices = @transform_6, window_bounds = array<i64: 2, 8, 128>}]} {
    %c0 = arith.constant 0 : index
    %c0_0 = arith.constant 0 : index
    %c0_1 = arith.constant 0 : index
    %0 = vector.load %arg1[%c0, %c0_0, %c0_1] : memref<2x8x128xf32, #tpu.memory_space<vmem>>, vector<2x8x128xf32>
    %1 = vector.shape_cast %0 : vector<2x8x128xf32> to vector<16x128xf32>
    %c0_2 = arith.constant 0 : index
    %c0_3 = arith.constant 0 : index
    %c0_4 = arith.constant 0 : index
    %2 = vector.load %arg2[%c0_2, %c0_3, %c0_4] : memref<2x128x128xf32, #tpu.memory_space<vmem>>, vector<2x128x128xf32>
    %3 = vector.shape_cast %2 : vector<2x128x128xf32> to vector<256x128xf32>
    %4 = tpu.concatenate %1, %3 in 0 : vector<16x128xf32>, vector<256x128xf32> -> vector<272x128xf32>
    %c0_5 = arith.constant 0 : index
    %c0_6 = arith.constant 0 : index
    %5 = vector.load %arg3[%c0_5, %c0_6] : memref<128x384xf32, #tpu.memory_space<vmem>>, vector<128x384xf32>
    %cst = arith.constant dense<0.000000e+00> : vector<272x384xf32>
    %6 = tpu.matmul %4, %5, %cst {dimension_numbers = #tpu.dot_dimension_numbers<[1], [0], [0], [1], [0, 0, 1, 1], [], []>} : vector<272x128xf32>, vector<128x384xf32>, vector<272x384xf32> -> vector<272x384xf32>
    %c0_7 = arith.constant 0 : index
    %c0_8 = arith.constant 0 : index
    %7 = vector.load %arg4[%c0_7, %c0_8] : memref<1x384xf32, #tpu.memory_space<vmem>>, vector<1x384xf32>
    %8 = vector.broadcast %7 : vector<1x384xf32> to vector<272x384xf32>
    %9 = arith.addf %6, %8 : vector<272x384xf32>
    %10 = vector.extract_strided_slice %9 {offsets = [0, 0], sizes = [16, 128], strides = [1, 1]} : vector<272x384xf32> to vector<16x128xf32>
    %11 = vector.extract_strided_slice %9 {offsets = [16, 128], sizes = [256, 256], strides = [1, 1]} : vector<272x384xf32> to vector<256x256xf32>
    %12 = vector.shape_cast %10 : vector<16x128xf32> to vector<2x8x128xf32>
    %13 = vector.extract_strided_slice %11 {offsets = [0, 0], sizes = [256, 128], strides = [1, 1]} : vector<256x256xf32> to vector<256x128xf32>
    %14 = vector.shape_cast %13 : vector<256x128xf32> to vector<2x128x128xf32>
    %15 = vector.extract_strided_slice %11 {offsets = [0, 128], sizes = [256, 128], strides = [1, 1]} : vector<256x256xf32> to vector<256x128xf32>
    %16 = vector.shape_cast %15 : vector<256x128xf32> to vector<2x128x128xf32>
    "tpu.trace_start"() <{level = 10 : i32, message = "bic,bcj->bij"}> : () -> ()
    %cst_9 = arith.constant dense<0.000000e+00> : vector<2x8x128xf32>
    %17 = tpu.matmul %12, %14, %cst_9 {dimension_numbers = #tpu.dot_dimension_numbers<[2], [1], [1], [2], [0, 0, 0, 1, 1, 2], [0], [0]>} : vector<2x8x128xf32>, vector<2x128x128xf32>, vector<2x8x128xf32> -> vector<2x8x128xf32>
    "tpu.trace_stop"() : () -> ()
    %cst_10 = arith.constant dense<0xFF800000> : vector<2x8xf32>
    %18 = vector.multi_reduction <maximumf>, %17, %cst_10 [2] : vector<2x8x128xf32> to vector<2x8xf32>
    %19 = vector.shape_cast %18 : vector<2x8xf32> to vector<2x8x1xf32>
    %20 = vector.broadcast %19 : vector<2x8x1xf32> to vector<2x8x128xf32>
    %21 = arith.subf %17, %20 : vector<2x8x128xf32>
    %22 = math.exp %21 : vector<2x8x128xf32>
    %cst_11 = arith.constant dense<0.000000e+00> : vector<2x8xf32>
    %23 = vector.multi_reduction <add>, %22, %cst_11 [2] : vector<2x8x128xf32> to vector<2x8xf32>
    %24 = vector.shape_cast %23 : vector<2x8xf32> to vector<2x8x1xf32>
    %25 = vector.broadcast %24 : vector<2x8x1xf32> to vector<2x8x128xf32>
    %26 = arith.divf %22, %25 : vector<2x8x128xf32>
    "tpu.trace_start"() <{level = 10 : i32, message = "bij,bjd->bid"}> : () -> ()
    %cst_12 = arith.constant dense<0.000000e+00> : vector<2x8x128xf32>
    %27 = tpu.matmul %26, %16, %cst_12 {dimension_numbers = #tpu.dot_dimension_numbers<[2], [1], [1], [2], [0, 0, 0, 1, 1, 2], [0], [0]>} : vector<2x8x128xf32>, vector<2x128x128xf32>, vector<2x8x128xf32> -> vector<2x8x128xf32>
    "tpu.trace_stop"() : () -> ()
    %28 = vector.shape_cast %27 : vector<2x8x128xf32> to vector<16x128xf32>
    %c0_13 = arith.constant 0 : index
    %c0_14 = arith.constant 0 : index
    %29 = vector.load %arg5[%c0_13, %c0_14] : memref<128x128xf32, #tpu.memory_space<vmem>>, vector<128x128xf32>
    %cst_15 = arith.constant dense<0.000000e+00> : vector<16x128xf32>
    %30 = tpu.matmul %28, %29, %cst_15 {dimension_numbers = #tpu.dot_dimension_numbers<[1], [0], [0], [1], [0, 0, 1, 1], [], []>} : vector<16x128xf32>, vector<128x128xf32>, vector<16x128xf32> -> vector<16x128xf32>
    %c0_16 = arith.constant 0 : index
    %c0_17 = arith.constant 0 : index
    %31 = vector.load %arg6[%c0_16, %c0_17] : memref<1x128xf32, #tpu.memory_space<vmem>>, vector<1x128xf32>
    %32 = vector.broadcast %31 : vector<1x128xf32> to vector<16x128xf32>
    %33 = arith.addf %30, %32 : vector<16x128xf32>
    %34 = vector.shape_cast %33 : vector<16x128xf32> to vector<2x8x128xf32>
    %c0_18 = arith.constant 0 : index
    %c0_19 = arith.constant 0 : index
    %c0_20 = arith.constant 0 : index
    %35 = vector.load %arg7[%c0_18, %c0_19, %c0_20] : memref<2x8x128xf32, #tpu.memory_space<vmem>>, vector<2x8x128xf32>
    tpu.vector_store %arg7[%c0_18, %c0_19, %c0_20], %34 {strides = array<i32>} : memref<2x8x128xf32, #tpu.memory_space<vmem>>, vector<2x8x128xf32>,
    return
  }
  func.func @transform_0(%arg0: i32) -> (i32, i32, i32) {
    %c0_i32 = arith.constant 0 : i32
    %c0_i32_0 = arith.constant 0 : i32
    %c0_i32_1 = arith.constant 0 : i32
    return %arg0, %c0_i32, %c0_i32_0 : i32, i32, i32
  }
  func.func @transform_1(%arg0: i32) -> (i32, i32, i32) {
    %c0_i32 = arith.constant 0 : i32
    %c0_i32_0 = arith.constant 0 : i32
    %c0_i32_1 = arith.constant 0 : i32
    return %arg0, %c0_i32, %c0_i32_0 : i32, i32, i32
  }
  func.func @transform_2(%arg0: i32) -> (i32, i32) {
    %c0_i32 = arith.constant 0 : i32
    %c0_i32_0 = arith.constant 0 : i32
    %c0_i32_1 = arith.constant 0 : i32
    return %c0_i32, %c0_i32_0 : i32, i32
  }
  func.func @transform_3(%arg0: i32) -> (i32, i32) {
    %c0_i32 = arith.constant 0 : i32
    %c0_i32_0 = arith.constant 0 : i32
    %c0_i32_1 = arith.constant 0 : i32
    return %c0_i32, %c0_i32_0 : i32, i32
  }
  func.func @transform_4(%arg0: i32) -> (i32, i32) {
    %c0_i32 = arith.constant 0 : i32
    %c0_i32_0 = arith.constant 0 : i32
    %c0_i32_1 = arith.constant 0 : i32
    return %c0_i32, %c0_i32_0 : i32, i32
  }
  func.func @transform_5(%arg0: i32) -> (i32, i32) {
    %c0_i32 = arith.constant 0 : i32
    %c0_i32_0 = arith.constant 0 : i32
    %c0_i32_1 = arith.constant 0 : i32
    return %c0_i32, %c0_i32_0 : i32, i32
  }
  func.func @transform_6(%arg0: i32) -> (i32, i32, i32) {
    %c0_i32 = arith.constant 0 : i32
    %c0_i32_0 = arith.constant 0 : i32
    %c0_i32_1 = arith.constant 0 : i32
    return %arg0, %c0_i32, %c0_i32_0 : i32, i32, i32
  }
}

module attributes {stable_mosaic.version = 11 : i64} {
  func.func @_attention_kernel(%arg0: i32, %arg1: memref<2x8x128xf32, #tpu.memory_space<vmem>>, %arg2: memref<2x128x128xf32, #tpu.memory_space<vmem>>, %arg3: memref<128x384xf32, #tpu.memory_space<vmem>>, %arg4: memref<1x384xf32, #tpu.memory_space<vmem>>, %arg5: memref<128x128xf32, #tpu.memory_space<vmem>>, %arg6: memref<1x128xf32, #tpu.memory_space<vmem>>, %arg7: memref<2x8x128xf32, #tpu.memory_space<vmem>>) attributes {dimension_semantics = [#tpu.dimension_semantics<parallel>], iteration_bounds = array<i64: 1>, scalar_prefetch = 0 : i64, scratch_operands = 0 : i64, tpu.core_type = #tpu.core_type<tc>, window_params = [{transform_indices = @transform_0, window_bounds = array<i64: 2, 8, 128>}, {transform_indices = @transform_1, window_bounds = array<i64: 2, 128, 128>}, {pipeline_mode = #tpu.pipeline_mode<synchronous>, transform_indices = @transform_2, window_bounds = array<i64: 128, 384>}, {pipeline_mode = #tpu.pipeline_mode<synchronous>, transform_indices = @transform_3, window_bounds = array<i64: 1, 384>}, {pipeline_mode = #tpu.pipeline_mode<synchronous>, transform_indices = @transform_4, window_bounds = array<i64: 128, 128>}, {pipeline_mode = #tpu.pipeline_mode<synchronous>, transform_indices = @transform_5, window_bounds = array<i64: 1, 128>}, {transform_indices = @transform_6, window_bounds = array<i64: 2, 8, 128>}]} {
    %c0 = arith.constant 0 : index
    %c0_0 = arith.constant 0 : index
    %c0_1 = arith.constant 0 : index
    %0 = vector.load %arg1[%c0, %c0_0, %c0_1] : memref<2x8x128xf32, #tpu.memory_space<vmem>>, vector<2x8x128xf32>
    %1 = vector.shape_cast %0 : vector<2x8x128xf32> to vector<16x128xf32>
    %c0_2 = arith.constant 0 : index
    %c0_3 = arith.constant 0 : index
    %c0_4 = arith.constant 0 : index
    %2 = vector.load %arg2[%c0_2, %c0_3, %c0_4] : memref<2x128x128xf32, #tpu.memory_space<vmem>>, vector<2x128x128xf32>
    %3 = vector.shape_cast %2 : vector<2x128x128xf32> to vector<256x128xf32>
    %4 = tpu.concatenate %1, %3 in 0 : vector<16x128xf32>, vector<256x128xf32> -> vector<272x128xf32>
    %c0_5 = arith.constant 0 : index
    %c0_6 = arith.constant 0 : index
    %5 = vector.load %arg3[%c0_5, %c0_6] : memref<128x384xf32, #tpu.memory_space<vmem>>, vector<128x384xf32>
    %cst = arith.constant dense<0.000000e+00> : vector<272x384xf32>
    %6 = tpu.matmul %4, %5, %cst {dimension_numbers = #tpu.dot_dimension_numbers<[1], [0], [0], [1], [0, 0, 1, 1], [], []>} : vector<272x128xf32>, vector<128x384xf32>, vector<272x384xf32> -> vector<272x384xf32>
    %c0_7 = arith.constant 0 : index
    %c0_8 = arith.constant 0 : index
    %7 = vector.load %arg4[%c0_7, %c0_8] : memref<1x384xf32, #tpu.memory_space<vmem>>, vector<1x384xf32>
    %8 = vector.broadcast %7 : vector<1x384xf32> to vector<272x384xf32>
    %9 = arith.addf %6, %8 : vector<272x384xf32>
    %10 = vector.extract_strided_slice %9 {offsets = [0, 0], sizes = [16, 128], strides = [1, 1]} : vector<272x384xf32> to vector<16x128xf32>
    %11 = vector.extract_strided_slice %9 {offsets = [16, 128], sizes = [256, 256], strides = [1, 1]} : vector<272x384xf32> to vector<256x256xf32>
    %12 = vector.shape_cast %10 : vector<16x128xf32> to vector<2x8x128xf32>
    %13 = vector.extract_strided_slice %11 {offsets = [0, 0], sizes = [256, 128], strides = [1, 1]} : vector<256x256xf32> to vector<256x128xf32>
    %14 = vector.shape_cast %13 : vector<256x128xf32> to vector<2x128x128xf32>
    %15 = vector.extract_strided_slice %11 {offsets = [0, 128], sizes = [256, 128], strides = [1, 1]} : vector<256x256xf32> to vector<256x128xf32>
    %16 = vector.shape_cast %15 : vector<256x128xf32> to vector<2x128x128xf32>
    "tpu.trace_start"() <{level = 10 : i32, message = "bic,bcj->bij"}> : () -> ()
    %cst_9 = arith.constant dense<0.000000e+00> : vector<2x8x128xf32>
    %17 = tpu.matmul %12, %14, %cst_9 {dimension_numbers = #tpu.dot_dimension_numbers<[2], [1], [1], [2], [0, 0, 0, 1, 1, 2], [0], [0]>} : vector<2x8x128xf32>, vector<2x128x128xf32>, vector<2x8x128xf32> -> vector<2x8x128xf32>
    "tpu.trace_stop"() : () -> ()
    %cst_10 = arith.constant dense<0xFF800000> : vector<2x8xf32>
    %18 = vector.multi_reduction <maximumf>, %17, %cst_10 [2] : vector<2x8x128xf32> to vector<2x8xf32>
    %19 = vector.shape_cast %18 : vector<2x8xf32> to vector<2x8x1xf32>
    %20 = vector.broadcast %19 : vector<2x8x1xf32> to vector<2x8x128xf32>
    %21 = arith.subf %17, %20 : vector<2x8x128xf32>
    %22 = math.exp %21 : vector<2x8x128xf32>
    %cst_11 = arith.constant dense<0.000000e+00> : vector<2x8xf32>
    %23 = vector.multi_reduction <add>, %22, %cst_11 [2] : vector<2x8x128xf32> to vector<2x8xf32>
    %24 = vector.shape_cast %23 : vector<2x8xf32> to vector<2x8x1xf32>
    %25 = vector.broadcast %24 : vector<2x8x1xf32> to vector<2x8x128xf32>
    %26 = arith.divf %22, %25 : vector<2x8x128xf32>
    "tpu.trace_start"() <{level = 10 : i32, message = "bij,bjd->bid"}> : () -> ()
    %cst_12 = arith.constant dense<0.000000e+00> : vector<2x8x128xf32>
    %27 = tpu.matmul %26, %16, %cst_12 {dimension_numbers = #tpu.dot_dimension_numbers<[2], [1], [1], [2], [0, 0, 0, 1, 1, 2], [0], [0]>} : vector<2x8x128xf32>, vector<2x128x128xf32>, vector<2x8x128xf32> -> vector<2x8x128xf32>
    "tpu.trace_stop"() : () -> ()
    %28 = vector.shape_cast %27 : vector<2x8x128xf32> to vector<16x128xf32>
    %c0_13 = arith.constant 0 : index
    %c0_14 = arith.constant 0 : index
    %29 = vector.load %arg5[%c0_13, %c0_14] : memref<128x128xf32, #tpu.memory_space<vmem>>, vector<128x128xf32>
    %cst_15 = arith.constant dense<0.000000e+00> : vector<16x128xf32>
    %30 = tpu.matmul %28, %29, %cst_15 {dimension_numbers = #tpu.dot_dimension_numbers<[1], [0], [0], [1], [0, 0, 1, 1], [], []>} : vector<16x128xf32>, vector<128x128xf32>, vector<16x128xf32> -> vector<16x128xf32>
    %c0_16 = arith.constant 0 : index
    %c0_17 = arith.constant 0 : index
    %31 = vector.load %arg6[%c0_16, %c0_17] : memref<1x128xf32, #tpu.memory_space<vmem>>, vector<1x128xf32>
    %32 = vector.broadcast %31 : vector<1x128xf32> to vector<16x128xf32>
    %33 = arith.addf %30, %32 : vector<16x128xf32>
    %34 = vector.shape_cast %33 : vector<16x128xf32> to vector<2x8x128xf32>
    %c0_18 = arith.constant 0 : index
    %c0_19 = arith.constant 0 : index
    %c0_20 = arith.constant 0 : index
    %35 = vector.load %arg7[%c0_18, %c0_19, %c0_20] : memref<2x8x128xf32, #tpu.memory_space<vmem>>, vector<2x8x128xf32>
    tpu.vector_store %arg7[%c0_18, %c0_19, %c0_20], %34 {strides = array<i32>} : memref<2x8x128xf32, #tpu.memory_space<vmem>>, vector<2x8x128xf32>,
    return
  }
  func.func @transform_0(%arg0: i32) -> (i32, i32, i32) {
    %c0_i32 = arith.constant 0 : i32
    %c0_i32_0 = arith.constant 0 : i32
    %c0_i32_1 = arith.constant 0 : i32
    return %arg0, %c0_i32, %c0_i32_0 : i32, i32, i32
  }
  func.func @transform_1(%arg0: i32) -> (i32, i32, i32) {
    %c0_i32 = arith.constant 0 : i32
    %c0_i32_0 = arith.constant 0 : i32
    %c0_i32_1 = arith.constant 0 : i32
    return %arg0, %c0_i32, %c0_i32_0 : i32, i32, i32
  }
  func.func @transform_2(%arg0: i32) -> (i32, i32) {
    %c0_i32 = arith.constant 0 : i32
    %c0_i32_0 = arith.constant 0 : i32
    %c0_i32_1 = arith.constant 0 : i32
    return %c0_i32, %c0_i32_0 : i32, i32
  }
  func.func @transform_3(%arg0: i32) -> (i32, i32) {
    %c0_i32 = arith.constant 0 : i32
    %c0_i32_0 = arith.constant 0 : i32
    %c0_i32_1 = arith.constant 0 : i32
    return %c0_i32, %c0_i32_0 : i32, i32
  }
  func.func @transform_4(%arg0: i32) -> (i32, i32) {
    %c0_i32 = arith.constant 0 : i32
    %c0_i32_0 = arith.constant 0 : i32
    %c0_i32_1 = arith.constant 0 : i32
    return %c0_i32, %c0_i32_0 : i32, i32
  }
  func.func @transform_5(%arg0: i32) -> (i32, i32) {
    %c0_i32 = arith.constant 0 : i32
    %c0_i32_0 = arith.constant 0 : i32
    %c0_i32_1 = arith.constant 0 : i32
    return %c0_i32, %c0_i32_0 : i32, i32
  }
  func.func @transform_6(%arg0: i32) -> (i32, i32, i32) {
    %c0_i32 = arith.constant 0 : i32
    %c0_i32_0 = arith.constant 0 : i32
    %c0_i32_1 = arith.constant 0 : i32
    return %arg0, %c0_i32, %c0_i32_0 : i32, i32, i32
  }
}

</mosaic_0001>

<llo_original>
// kernel: tpu_custom_call.1
$region0: #{tpu_custom_call.1}
  #allocation0 [shape = 'u32[]', space=smem, size = 0x4, offset = 0x4, fixed_abs, tag = 'smem constant byte address 0x4 - core index']
  #allocation1 [shape = 'u32[144,128]{1,0:T(1,128)}', space=vmem, size = 0x12000, scoped, tag = 'internal scratch']
  %s0 = inlined_call_operand.hbm [shape: f32[2,8,128], index: 0, kind: input, shape index: {}]
  %s1 = inlined_call_operand.hbm [shape: f32[2,128,128], index: 1, kind: input, shape index: {}]
  %s2 = inlined_call_operand.hbm [shape: f32[128,384], index: 2, kind: input, shape index: {}]
  %s3 = inlined_call_operand.vmem [shape: f32[1,384], index: 3, kind: input, shape index: {}]
  %s4 = inlined_call_operand.hbm [shape: f32[128,128], index: 4, kind: input, shape index: {}]
  %s5 = inlined_call_operand.vmem [shape: f32[1,128], index: 5, kind: input, shape index: {}]
  %s6 = inlined_call_operand.hbm [shape: f32[2,8,128], index: 6, kind: output, shape index: {}]
  %s7 = sld [smem:[#allocation0]]
  $region50: #{tpu_custom_call.1} parent=0
    _
  %s9 = ssub.s32 1, %s7
  %s10 = scalar_select 0, %s9, %s7
  $region1: #{tpu_custom_call.1} parent=0
    #allocation2 [shape = 'u8[8192]{0}', space=vmem, size = 0x2000, scoped, tag = 'input window, operand 0, single buffered']
    #allocation3 [shape = 's32[1]{0}', space=sflag, size = 0x4, scoped, tag = 'scoped memory for tpu_custom_call.1']
    #allocation4 [shape = 's32[1]{0}', space=sflag, size = 0x4, scoped, tag = 'scoped memory for tpu_custom_call.1']
    #allocation5 [shape = 'u8[131072]{0}', space=vmem, size = 0x20000, scoped, tag = 'input window, operand 1, single buffered']
    #allocation6 [shape = 's32[1]{0}', space=sflag, size = 0x4, scoped, tag = 'scoped memory for tpu_custom_call.1']
    #allocation7 [shape = 'u8[196608]{0}', space=vmem, size = 0x30000, scoped, tag = 'input window, operand 2, single buffered']
    #allocation8 [shape = 'u8[65536]{0}', space=vmem, size = 0x10000, scoped, tag = 'input window, operand 4, single buffered']
    #allocation9 [shape = 's32[1]{0}', space=sflag, size = 0x4, scoped, tag = 'scoped memory for tpu_custom_call.1']
    #allocation10 [shape = 'u8[8192]{0}', space=vmem, size = 0x2000, scoped, tag = 'output window, operand 0, single buffered']
    %11 = vsyncpa [#allocation3], 0
    %12 = vsyncpa [#allocation6], 0
    %13 = vsyncpa [#allocation9], 0
    %14 = vsyncpa [#allocation4], 0
    // Predicated region
    $region2: #{tpu_custom_call.1} parent=1 // pred_check
      _
    $region3: #{tpu_custom_call.1} parent=1 // pred_check_branch
      %16 = sbr.rel (0) target = $region5
    $region4: #{tpu_custom_call.1} parent=1 // pred_region
      %s18 = ssub.s32 256, 256
      %19 = vsyncadd [#allocation3], %s18
      %s20 = sshll.u32 [#allocation2], 4
      %s21 = int_to_ptr.vmem [resolvable:$true] %s20
      %26 = dma.hbm_to_vmem [thread:$0]  %s0, 256, %s21, [#allocation3], 128, 128, 8
    $region5: #{tpu_custom_call.1} parent=1 // pred_fallthru
      _
    // Predicated region
    $region6: #{tpu_custom_call.1} parent=1 // pred_check
      _
    $region7: #{tpu_custom_call.1} parent=1 // pred_check_branch
      %28 = sbr.rel (0) target = $region9
    $region8: #{tpu_custom_call.1} parent=1 // pred_region
      %s30 = ssub.s32 4096, 4096
      %31 = vsyncadd [#allocation6], %s30
      %s32 = sshll.u32 [#allocation5], 4
      %s33 = int_to_ptr.vmem [resolvable:$true] %s32
      %38 = dma.hbm_to_vmem [thread:$0]  %s1, 4096, %s33, [#allocation6], 128, 128, 8
    $region9: #{tpu_custom_call.1} parent=1 // pred_fallthru
      _
    // Predicated region
    $region10: #{tpu_custom_call.1} parent=1 // pred_check
      _
    $region11: #{tpu_custom_call.1} parent=1 // pred_check_branch
      %40 = sbr.rel (0) target = $region13
    $region12: #{tpu_custom_call.1} parent=1 // pred_region
      %s42 = ssub.s32 6144, 6144
      %43 = vsyncadd [#allocation6], %s42
      %s44 = sshll.u32 [#allocation7], 4
      %s45 = int_to_ptr.vmem [resolvable:$true] %s44
      %50 = dma.hbm_to_vmem [thread:$0]  %s2, 6144, %s45, [#allocation6], 384, 384, 24
    $region13: #{tpu_custom_call.1} parent=1 // pred_fallthru
      _
    // Predicated region
    $region14: #{tpu_custom_call.1} parent=1 // pred_check
      _
    $region15: #{tpu_custom_call.1} parent=1 // pred_check_branch
      %52 = sbr.rel (0) target = $region17
    $region16: #{tpu_custom_call.1} parent=1 // pred_region
      _
    $region17: #{tpu_custom_call.1} parent=1 // pred_fallthru
      _
    // Predicated region
    $region18: #{tpu_custom_call.1} parent=1 // pred_check
      _
    $region19: #{tpu_custom_call.1} parent=1 // pred_check_branch
      %54 = sbr.rel (0) target = $region21
    $region20: #{tpu_custom_call.1} parent=1 // pred_region
      %s56 = ssub.s32 2048, 2048
      %57 = vsyncadd [#allocation9], %s56
      %s58 = sshll.u32 [#allocation8], 4
      %s59 = int_to_ptr.vmem [resolvable:$true] %s58
      %64 = dma.hbm_to_vmem [thread:$0]  %s4, 2048, %s59, [#allocation9], 128, 128, 8
    $region21: #{tpu_custom_call.1} parent=1 // pred_fallthru
      _
    // Predicated region
    $region22: #{tpu_custom_call.1} parent=1 // pred_check
      _
    $region23: #{tpu_custom_call.1} parent=1 // pred_check_branch
      %66 = sbr.rel (0) target = $region25
    $region24: #{tpu_custom_call.1} parent=1 // pred_region
      _
    $region25: #{tpu_custom_call.1} parent=1 // pred_fallthru
      _
    // Predicated region
    $region26: #{tpu_custom_call.1} parent=1 // pred_check
      _
    $region27: #{tpu_custom_call.1} parent=1 // pred_check_branch
      %68 = sbr.rel (0) target = $region29
    $region28: #{tpu_custom_call.1} parent=1 // pred_region
      %69 = dma.done [#allocation3], 256
    $region29: #{tpu_custom_call.1} parent=1 // pred_fallthru
      _
    // Predicated region
    $region30: #{tpu_custom_call.1} parent=1 // pred_check
      _
    $region31: #{tpu_custom_call.1} parent=1 // pred_check_branch
      %71 = sbr.rel (0) target = $region33
    $region32: #{tpu_custom_call.1} parent=1 // pred_region
      %72 = dma.done [#allocation6], 4096
    $region33: #{tpu_custom_call.1} parent=1 // pred_fallthru
      _
    // Predicated region
    $region34: #{tpu_custom_call.1} parent=1 // pred_check
      _
    $region35: #{tpu_custom_call.1} parent=1 // pred_check_branch
      %74 = sbr.rel (0) target = $region37
    $region36: #{tpu_custom_call.1} parent=1 // pred_region
      %75 = dma.done [#allocation6], 6144
    $region37: #{tpu_custom_call.1} parent=1 // pred_fallthru
      _
    // Predicated region
    $region38: #{tpu_custom_call.1} parent=1 // pred_check
      _
    $region39: #{tpu_custom_call.1} parent=1 // pred_check_branch
      %77 = sbr.rel (0) target = $region41
    $region40: #{tpu_custom_call.1} parent=1 // pred_region
      %78 = dma.done [#allocation9], 2048
    $region41: #{tpu_custom_call.1} parent=1 // pred_fallthru
      _
    %v79 = vld [vmem:[#allocation2] sm:$0xff]
    %v80 = vld [vmem:[#allocation2 + $0x8] sm:$0xff]
    %v81 = vld [vmem:[#allocation5] sm:$0xff]
    %v82 = vld [vmem:[#allocation5 + $0x8] sm:$0xff]
    %v83 = vld [vmem:[#allocation5 + $0x10] sm:$0xff]
    %v84 = vld [vmem:[#allocation5 + $0x18] sm:$0xff]
    %v85 = vld [vmem:[#allocation5 + $0x20] sm:$0xff]
    %v86 = vld [vmem:[#allocation5 + $0x28] sm:$0xff]
    %v87 = vld [vmem:[#allocation5 + $0x30] sm:$0xff]
    %v88 = vld [vmem:[#allocation5 + $0x38] sm:$0xff]
    %v89 = vld [vmem:[#allocation5 + $0x40] sm:$0xff]
    %v90 = vld [vmem:[#allocation5 + $0x48] sm:$0xff]
    %v91 = vld [vmem:[#allocation5 + $0x50] sm:$0xff]
    %v92 = vld [vmem:[#allocation5 + $0x58] sm:$0xff]
    %v93 = vld [vmem:[#allocation5 + $0x60] sm:$0xff]
    %v94 = vld [vmem:[#allocation5 + $0x68] sm:$0xff]
    %v95 = vld [vmem:[#allocation5 + $0x70] sm:$0xff]
    %v96 = vld [vmem:[#allocation5 + $0x78] sm:$0xff]
    %v97 = vld [vmem:[#allocation5 + $0x80] sm:$0xff]
    %v98 = vld [vmem:[#allocation5 + $0x88] sm:$0xff]
    %v99 = vld [vmem:[#allocation5 + $0x90] sm:$0xff]
    %v100 = vld [vmem:[#allocation5 + $0x98] sm:$0xff]
    %v101 = vld [vmem:[#allocation5 + $0xa0] sm:$0xff]
    %v102 = vld [vmem:[#allocation5 + $0xa8] sm:$0xff]
    %v103 = vld [vmem:[#allocation5 + $0xb0] sm:$0xff]
    %v104 = vld [vmem:[#allocation5 + $0xb8] sm:$0xff]
    %v105 = vld [vmem:[#allocation5 + $0xc0] sm:$0xff]
    %v106 = vld [vmem:[#allocation5 + $0xc8] sm:$0xff]
    %v107 = vld [vmem:[#allocation5 + $0xd0] sm:$0xff]
    %v108 = vld [vmem:[#allocation5 + $0xd8] sm:$0xff]
    %v109 = vld [vmem:[#allocation5 + $0xe0] sm:$0xff]
    %v110 = vld [vmem:[#allocation5 + $0xe8] sm:$0xff]
    %v111 = vld [vmem:[#allocation5 + $0xf0] sm:$0xff]
    %v112 = vld [vmem:[#allocation5 + $0xf8] sm:$0xff]
    %v113 = vld [vmem:[#allocation7] sm:$0xff]
    %v114 = vld [vmem:[#allocation7 + $0x8] sm:$0xff]
    %v115 = vld [vmem:[#allocation7 + $0x10] sm:$0xff]
    %v116 = vld [vmem:[#allocation7 + $0x18] sm:$0xff]
    %v117 = vld [vmem:[#allocation7 + $0x20] sm:$0xff]
    %v118 = vld [vmem:[#allocation7 + $0x28] sm:$0xff]
    %v119 = vld [vmem:[#allocation7 + $0x30] sm:$0xff]
    %v120 = vld [vmem:[#allocation7 + $0x38] sm:$0xff]
    %v121 = vld [vmem:[#allocation7 + $0x40] sm:$0xff]
    %v122 = vld [vmem:[#allocation7 + $0x48] sm:$0xff]
    %v123 = vld [vmem:[#allocation7 + $0x50] sm:$0xff]
    %v124 = vld [vmem:[#allocation7 + $0x58] sm:$0xff]
    %v125 = vld [vmem:[#allocation7 + $0x60] sm:$0xff]
    %v126 = vld [vmem:[#allocation7 + $0x68] sm:$0xff]
    %v127 = vld [vmem:[#allocation7 + $0x70] sm:$0xff]
    %v128 = vld [vmem:[#allocation7 + $0x78] sm:$0xff]
    %v129 = vld [vmem:[#allocation7 + $0x80] sm:$0xff]
    %v130 = vld [vmem:[#allocation7 + $0x88] sm:$0xff]
    %v131 = vld [vmem:[#allocation7 + $0x90] sm:$0xff]
    %v132 = vld [vmem:[#allocation7 + $0x98] sm:$0xff]
    %v133 = vld [vmem:[#allocation7 + $0xa0] sm:$0xff]
    %v134 = vld [vmem:[#allocation7 + $0xa8] sm:$0xff]
    %v135 = vld [vmem:[#allocation7 + $0xb0] sm:$0xff]
    %v136 = vld [vmem:[#allocation7 + $0xb8] sm:$0xff]
    %v137 = vld [vmem:[#allocation7 + $0xc0] sm:$0xff]
    %v138 = vld [vmem:[#allocation7 + $0xc8] sm:$0xff]
    %v139 = vld [vmem:[#allocation7 + $0xd0] sm:$0xff]
    %v140 = vld [vmem:[#allocation7 + $0xd8] sm:$0xff]
    %v141 = vld [vmem:[#allocation7 + $0xe0] sm:$0xff]
    %v142 = vld [vmem:[#allocation7 + $0xe8] sm:$0xff]
    %v143 = vld [vmem:[#allocation7 + $0xf0] sm:$0xff]
    %v144 = vld [vmem:[#allocation7 + $0xf8] sm:$0xff]
    %v145 = vld [vmem:[#allocation7 + $0x100] sm:$0xff]
    %v146 = vld [vmem:[#allocation7 + $0x108] sm:$0xff]
    %v147 = vld [vmem:[#allocation7 + $0x110] sm:$0xff]
    %v148 = vld [vmem:[#allocation7 + $0x118] sm:$0xff]
    %v149 = vld [vmem:[#allocation7 + $0x120] sm:$0xff]
    %v150 = vld [vmem:[#allocation7 + $0x128] sm:$0xff]
    %v151 = vld [vmem:[#allocation7 + $0x130] sm:$0xff]
    %v152 = vld [vmem:[#allocation7 + $0x138] sm:$0xff]
    %v153 = vld [vmem:[#allocation7 + $0x140] sm:$0xff]
    %v154 = vld [vmem:[#allocation7 + $0x148] sm:$0xff]
    %v155 = vld [vmem:[#allocation7 + $0x150] sm:$0xff]
    %v156 = vld [vmem:[#allocation7 + $0x158] sm:$0xff]
    %v157 = vld [vmem:[#allocation7 + $0x160] sm:$0xff]
    %v158 = vld [vmem:[#allocation7 + $0x168] sm:$0xff]
    %v159 = vld [vmem:[#allocation7 + $0x170] sm:$0xff]
    %v160 = vld [vmem:[#allocation7 + $0x178] sm:$0xff]
    %v161 = vld [vmem:[%s3] sm:$0x7]
    %v163 = vlaneseq
    %v164 = vshrl.u32 %v163, 7
    %v165 = vsub.s32 0, %v164
    %v166 = vrot.slane %v161, %v165
    %v167 = vlaneseq
    %v168 = vshrl.u32 %v167, 7
    %v169 = vsub.s32 1, %v168
    %v170 = vrot.slane %v161, %v169
    %v171 = vlaneseq
    %v172 = vshrl.u32 %v171, 7
    %v173 = vsub.s32 2, %v172
    %v174 = vrot.slane %v161, %v173
    %178 = vmatprep.subr.mxu0 %v159
    %179 = vmatpush1.msra.mxu0 %v158
    %180 = vmatprep.subr.mxu0 %v156
    %181 = vmatpush1.msra.mxu0 %v155
    %182 = vmatprep.subr.mxu0 %v153
    %183 = vmatpush1.msra.mxu0 %v152
    %184 = vmatprep.subr.mxu0 %v150
    %185 = vmatpush1.msra.mxu0 %v149
    %186 = vmatprep.subr.mxu0 %v147
    %187 = vmatpush1.msra.mxu0 %v146
    %188 = vmatprep.subr.mxu0 %v144
    %189 = vmatpush1.msra.mxu0 %v143
    %190 = vmatprep.subr.mxu0 %v141
    %191 = vmatpush1.msra.mxu0 %v140
    %192 = vmatprep.subr.mxu0 %v138
    %193 = vmatpush1.msra.mxu0 %v137
    %194 = vmatprep.subr.mxu0 %v135
    %195 = vmatpush1.msra.mxu0 %v134
    %196 = vmatprep.subr.mxu0 %v132
    %197 = vmatpush1.msra.mxu0 %v131
    %198 = vmatprep.subr.mxu0 %v129
    %199 = vmatpush1.msra.mxu0 %v128
    %200 = vmatprep.subr.mxu0 %v126
    %201 = vmatpush1.msra.mxu0 %v125
    %202 = vmatprep.subr.mxu0 %v123
    %203 = vmatpush1.msra.mxu0 %v122
    %204 = vmatprep.subr.mxu0 %v120
    %205 = vmatpush1.msra.mxu0 %v119
    %206 = vmatprep.subr.mxu0 %v117
    %207 = vmatpush1.msra.mxu0 %v116
    %208 = vmatprep.subr.mxu0 %v114
    %209 = vmatpush1.msra.mxu0 %v113
    %210 = vmatprep.subr.mxu0 0.0
    %211 = vmatpush2.msra.mxu0 0.0
    %212 = vmatprep.subr.mxu0 0.0
    %213 = vmatpush2.msra.mxu0 0.0
    %214 = vmatprep.subr.mxu0 0.0
    %215 = vmatpush2.msra.mxu0 0.0
    %216 = vmatprep.subr.mxu0 0.0
    %217 = vmatpush2.msra.mxu0 0.0
    %218 = vmatprep.subr.mxu0 0.0
    %219 = vmatpush2.msra.mxu0 0.0
    %220 = vmatprep.subr.mxu0 0.0
    %221 = vmatpush2.msra.mxu0 0.0
    %222 = vmatprep.subr.mxu0 0.0
    %223 = vmatpush2.msra.mxu0 0.0
    %224 = vmatprep.subr.mxu0 0.0
    %225 = vmatpush2.msra.mxu0 0.0
    %226 = vmatprep.subr.mxu0 0.0
    %227 = vmatpush2.msra.mxu0 0.0
    %228 = vmatprep.subr.mxu0 0.0
    %229 = vmatpush2.msra.mxu0 0.0
    %230 = vmatprep.subr.mxu0 0.0
    %231 = vmatpush2.msra.mxu0 0.0
    %232 = vmatprep.subr.mxu0 0.0
    %233 = vmatpush2.msra.mxu0 0.0
    %234 = vmatprep.subr.mxu0 0.0
    %235 = vmatpush2.msra.mxu0 0.0
    %236 = vmatprep.subr.mxu0 0.0
    %237 = vmatpush2.msra.mxu0 0.0
    %238 = vmatprep.subr.mxu0 0.0
    %239 = vmatpush2.msra.mxu0 0.0
    %240 = vmatprep.subr.mxu0 0.0
    %241 = vmatpush2.msra.mxu0 0.0
    %242 = vmatprep.mubr.f32.mxu0 0.0
    %243 = vmatmul.mubr.f32.gmra.mxu0 %v79
    %v244 = vpop.f32.mrf.mxu0
    %v245 = vadd.f32 %v166, %v244
    %v246 = vpop.f32.mrf.mxu0
    %247 = vmatprep.mubr.f32.mxu0 0.0
    %248 = vmatmul.mubr.f32.gmra.mxu0 %v80
    %v249 = vpop.f32.mrf.mxu0
    %v250 = vadd.f32 %v166, %v249
    %v251 = vpop.f32.mrf.mxu0
    %252 = vmatprep.mubr.f32.mxu0 0.0
    %253 = vmatmul.mubr.f32.gmra.mxu0 %v81
    %v254 = vpop.f32.mrf.mxu0
    %v255 = vpop.f32.mrf.mxu0
    %v256 = vadd.f32 %v170, %v255
    %257 = vmatprep.mubr.f32.mxu0 0.0
    %258 = vmatmul.mubr.f32.gmra.mxu0 %v82
    %v259 = vpop.f32.mrf.mxu0
    %v260 = vpop.f32.mrf.mxu0
    %v261 = vadd.f32 %v170, %v260
    %262 = vmatprep.mubr.f32.mxu0 0.0
    %263 = vmatmul.mubr.f32.gmra.mxu0 %v83
    %v264 = vpop.f32.mrf.mxu0
    %v265 = vpop.f32.mrf.mxu0
    %v266 = vadd.f32 %v170, %v265
    %267 = vmatprep.mubr.f32.mxu0 0.0
    %268 = vmatmul.mubr.f32.gmra.mxu0 %v84
    %v269 = vpop.f32.mrf.mxu0
    %v270 = vpop.f32.mrf.mxu0
    %v271 = vadd.f32 %v170, %v270
    %272 = vmatprep.mubr.f32.mxu0 0.0
    %273 = vmatmul.mubr.f32.gmra.mxu0 %v85
    %v274 = vpop.f32.mrf.mxu0
    %v275 = vpop.f32.mrf.mxu0
    %v276 = vadd.f32 %v170, %v275
    %277 = vmatprep.mubr.f32.mxu0 0.0
    %278 = vmatmul.mubr.f32.gmra.mxu0 %v86
    %v279 = vpop.f32.mrf.mxu0
    %v280 = vpop.f32.mrf.mxu0
    %v281 = vadd.f32 %v170, %v280
    %282 = vmatprep.mubr.f32.mxu0 0.0
    %283 = vmatmul.mubr.f32.gmra.mxu0 %v87
    %v284 = vpop.f32.mrf.mxu0
    %v285 = vpop.f32.mrf.mxu0
    %v286 = vadd.f32 %v170, %v285
    %287 = vmatprep.mubr.f32.mxu0 0.0
    %288 = vmatmul.mubr.f32.gmra.mxu0 %v88
    %v289 = vpop.f32.mrf.mxu0
    %v290 = vpop.f32.mrf.mxu0
    %v291 = vadd.f32 %v170, %v290
    %292 = vmatprep.mubr.f32.mxu0 0.0
    %293 = vmatmul.mubr.f32.gmra.mxu0 %v89
    %v294 = vpop.f32.mrf.mxu0
    %v295 = vpop.f32.mrf.mxu0
    %v296 = vadd.f32 %v170, %v295
    %297 = vmatprep.mubr.f32.mxu0 0.0
    %298 = vmatmul.mubr.f32.gmra.mxu0 %v90
    %v299 = vpop.f32.mrf.mxu0
    %v300 = vpop.f32.mrf.mxu0
    %v301 = vadd.f32 %v170, %v300
    %302 = vmatprep.mubr.f32.mxu0 0.0
    %303 = vmatmul.mubr.f32.gmra.mxu0 %v91
    %v304 = vpop.f32.mrf.mxu0
    %v305 = vpop.f32.mrf.mxu0
    %v306 = vadd.f32 %v170, %v305
    %307 = vmatprep.mubr.f32.mxu0 0.0
    %308 = vmatmul.mubr.f32.gmra.mxu0 %v92
    %v309 = vpop.f32.mrf.mxu0
    %v310 = vpop.f32.mrf.mxu0
    %v311 = vadd.f32 %v170, %v310
    %312 = vmatprep.mubr.f32.mxu0 0.0
    %313 = vmatmul.mubr.f32.gmra.mxu0 %v93
    %v314 = vpop.f32.mrf.mxu0
    %v315 = vpop.f32.mrf.mxu0
    %v316 = vadd.f32 %v170, %v315
    %317 = vmatprep.mubr.f32.mxu0 0.0
    %318 = vmatmul.mubr.f32.gmra.mxu0 %v94
    %v319 = vpop.f32.mrf.mxu0
    %v320 = vpop.f32.mrf.mxu0
    %v321 = vadd.f32 %v170, %v320
    %322 = vmatprep.mubr.f32.mxu0 0.0
    %323 = vmatmul.mubr.f32.gmra.mxu0 %v95
    %v324 = vpop.f32.mrf.mxu0
    %v325 = vpop.f32.mrf.mxu0
    %v326 = vadd.f32 %v170, %v325
    %327 = vmatprep.mubr.f32.mxu0 0.0
    %328 = vmatmul.mubr.f32.gmra.mxu0 %v96
    %v329 = vpop.f32.mrf.mxu0
    %v330 = vpop.f32.mrf.mxu0
    %v331 = vadd.f32 %v170, %v330
    %332 = vmatprep.mubr.f32.mxu0 0.0
    %333 = vmatmul.mubr.f32.gmra.mxu0 %v97
    %v334 = vpop.f32.mrf.mxu0
    %v335 = vpop.f32.mrf.mxu0
    %v336 = vadd.f32 %v170, %v335
    %337 = vmatprep.mubr.f32.mxu0 0.0
    %338 = vmatmul.mubr.f32.gmra.mxu0 %v98
    %v339 = vpop.f32.mrf.mxu0
    %v340 = vpop.f32.mrf.mxu0
    %v341 = vadd.f32 %v170, %v340
    %342 = vmatprep.mubr.f32.mxu0 0.0
    %343 = vmatmul.mubr.f32.gmra.mxu0 %v99
    %v344 = vpop.f32.mrf.mxu0
    %v345 = vpop.f32.mrf.mxu0
    %v346 = vadd.f32 %v170, %v345
    %347 = vmatprep.mubr.f32.mxu0 0.0
    %348 = vmatmul.mubr.f32.gmra.mxu0 %v100
    %v349 = vpop.f32.mrf.mxu0
    %v350 = vpop.f32.mrf.mxu0
    %v351 = vadd.f32 %v170, %v350
    %352 = vmatprep.mubr.f32.mxu0 0.0
    %353 = vmatmul.mubr.f32.gmra.mxu0 %v101
    %v354 = vpop.f32.mrf.mxu0
    %v355 = vpop.f32.mrf.mxu0
    %v356 = vadd.f32 %v170, %v355
    %357 = vmatprep.mubr.f32.mxu0 0.0
    %358 = vmatmul.mubr.f32.gmra.mxu0 %v102
    %v359 = vpop.f32.mrf.mxu0
    %v360 = vpop.f32.mrf.mxu0
    %v361 = vadd.f32 %v170, %v360
    %362 = vmatprep.mubr.f32.mxu0 0.0
    %363 = vmatmul.mubr.f32.gmra.mxu0 %v103
    %v364 = vpop.f32.mrf.mxu0
    %v365 = vpop.f32.mrf.mxu0
    %v366 = vadd.f32 %v170, %v365
    %367 = vmatprep.mubr.f32.mxu0 0.0
    %368 = vmatmul.mubr.f32.gmra.mxu0 %v104
    %v369 = vpop.f32.mrf.mxu0
    %v370 = vpop.f32.mrf.mxu0
    %v371 = vadd.f32 %v170, %v370
    %372 = vmatprep.mubr.f32.mxu0 0.0
    %373 = vmatmul.mubr.f32.gmra.mxu0 %v105
    %v374 = vpop.f32.mrf.mxu0
    %v375 = vpop.f32.mrf.mxu0
    %v376 = vadd.f32 %v170, %v375
    %377 = vmatprep.mubr.f32.mxu0 0.0
    %378 = vmatmul.mubr.f32.gmra.mxu0 %v106
    %v379 = vpop.f32.mrf.mxu0
    %v380 = vpop.f32.mrf.mxu0
    %v381 = vadd.f32 %v170, %v380
    %382 = vmatprep.mubr.f32.mxu0 0.0
    %383 = vmatmul.mubr.f32.gmra.mxu0 %v107
    %v384 = vpop.f32.mrf.mxu0
    %v385 = vpop.f32.mrf.mxu0
    %v386 = vadd.f32 %v170, %v385
    %387 = vmatprep.mubr.f32.mxu0 0.0
    %388 = vmatmul.mubr.f32.gmra.mxu0 %v108
    %v389 = vpop.f32.mrf.mxu0
    %v390 = vpop.f32.mrf.mxu0
    %v391 = vadd.f32 %v170, %v390
    %392 = vmatprep.mubr.f32.mxu0 0.0
    %393 = vmatmul.mubr.f32.gmra.mxu0 %v109
    %v394 = vpop.f32.mrf.mxu0
    %v395 = vpop.f32.mrf.mxu0
    %v396 = vadd.f32 %v170, %v395
    %397 = vmatprep.mubr.f32.mxu0 0.0
    %398 = vmatmul.mubr.f32.gmra.mxu0 %v110
    %v399 = vpop.f32.mrf.mxu0
    %v400 = vpop.f32.mrf.mxu0
    %v401 = vadd.f32 %v170, %v400
    %402 = vmatprep.mubr.f32.mxu0 0.0
    %403 = vmatmul.mubr.f32.gmra.mxu0 %v111
    %v404 = vpop.f32.mrf.mxu0
    %v405 = vpop.f32.mrf.mxu0
    %v406 = vadd.f32 %v170, %v405
    %407 = vmatprep.mubr.f32.mxu0 0.0
    %408 = vmatmul.mubr.f32.gmra.mxu0 %v112
    %v409 = vpop.f32.mrf.mxu0
    %v410 = vpop.f32.mrf.mxu0
    %v411 = vadd.f32 %v170, %v410
    %412 = vdwg.mxu0
    %413 = vmatprep.subr.mxu0 0.0
    %414 = vmatpush1.msra.mxu0 %v160
    %415 = vmatprep.subr.mxu0 0.0
    %416 = vmatpush1.msra.mxu0 %v157
    %417 = vmatprep.subr.mxu0 0.0
    %418 = vmatpush1.msra.mxu0 %v154
    %419 = vmatprep.subr.mxu0 0.0
    %420 = vmatpush1.msra.mxu0 %v151
    %421 = vmatprep.subr.mxu0 0.0
    %422 = vmatpush1.msra.mxu0 %v148
    %423 = vmatprep.subr.mxu0 0.0
    %424 = vmatpush1.msra.mxu0 %v145
    %425 = vmatprep.subr.mxu0 0.0
    %426 = vmatpush1.msra.mxu0 %v142
    %427 = vmatprep.subr.mxu0 0.0
    %428 = vmatpush1.msra.mxu0 %v139
    %429 = vmatprep.subr.mxu0 0.0
    %430 = vmatpush1.msra.mxu0 %v136
    %431 = vmatprep.subr.mxu0 0.0
    %432 = vmatpush1.msra.mxu0 %v133
    %433 = vmatprep.subr.mxu0 0.0
    %434 = vmatpush1.msra.mxu0 %v130
    %435 = vmatprep.subr.mxu0 0.0
    %436 = vmatpush1.msra.mxu0 %v127
    %437 = vmatprep.subr.mxu0 0.0
    %438 = vmatpush1.msra.mxu0 %v124
    %439 = vmatprep.subr.mxu0 0.0
    %440 = vmatpush1.msra.mxu0 %v121
    %441 = vmatprep.subr.mxu0 0.0
    %442 = vmatpush1.msra.mxu0 %v118
    %443 = vmatprep.subr.mxu0 0.0
    %444 = vmatpush1.msra.mxu0 %v115
    %445 = vmatprep.subr.mxu0 0.0
    %446 = vmatpush2.msra.mxu0 0.0
    %447 = vmatprep.subr.mxu0 0.0
    %448 = vmatpush2.msra.mxu0 0.0
    %449 = vmatprep.subr.mxu0 0.0
    %450 = vmatpush2.msra.mxu0 0.0
    %451 = vmatprep.subr.mxu0 0.0
    %452 = vmatpush2.msra.mxu0 0.0
    %453 = vmatprep.subr.mxu0 0.0
    %454 = vmatpush2.msra.mxu0 0.0
    %455 = vmatprep.subr.mxu0 0.0
    %456 = vmatpush2.msra.mxu0 0.0
    %457 = vmatprep.subr.mxu0 0.0
    %458 = vmatpush2.msra.mxu0 0.0
    %459 = vmatprep.subr.mxu0 0.0
    %460 = vmatpush2.msra.mxu0 0.0
    %461 = vmatprep.subr.mxu0 0.0
    %462 = vmatpush2.msra.mxu0 0.0
    %463 = vmatprep.subr.mxu0 0.0
    %464 = vmatpush2.msra.mxu0 0.0
    %465 = vmatprep.subr.mxu0 0.0
    %466 = vmatpush2.msra.mxu0 0.0
    %467 = vmatprep.subr.mxu0 0.0
    %468 = vmatpush2.msra.mxu0 0.0
    %469 = vmatprep.subr.mxu0 0.0
    %470 = vmatpush2.msra.mxu0 0.0
    %471 = vmatprep.subr.mxu0 0.0
    %472 = vmatpush2.msra.mxu0 0.0
    %473 = vmatprep.subr.mxu0 0.0
    %474 = vmatpush2.msra.mxu0 0.0
    %475 = vmatprep.subr.mxu0 0.0
    %476 = vmatpush2.msra.mxu0 0.0
    %477 = vmatprep.mubr.f32.mxu0 0.0
    %478 = vmatmul.mubr.f32.gmra.mxu0 %v79
    %v479 = vpop.f32.mrf.mxu0
    %v480 = vpop.f32.mrf.mxu0
    %481 = vmatprep.mubr.f32.mxu0 0.0
    %482 = vmatmul.mubr.f32.gmra.mxu0 %v80
    %v483 = vpop.f32.mrf.mxu0
    %v484 = vpop.f32.mrf.mxu0
    %485 = vmatprep.mubr.f32.mxu0 0.0
    %486 = vmatmul.mubr.f32.gmra.mxu0 %v81
    %v487 = vpop.f32.mrf.mxu0
    %v488 = vadd.f32 %v174, %v487
    %v489 = vpop.f32.mrf.mxu0
    %490 = vmatprep.mubr.f32.mxu0 0.0
    %491 = vmatmul.mubr.f32.gmra.mxu0 %v82
    %v492 = vpop.f32.mrf.mxu0
    %v493 = vadd.f32 %v174, %v492
    %v494 = vpop.f32.mrf.mxu0
    %495 = vmatprep.mubr.f32.mxu0 0.0
    %496 = vmatmul.mubr.f32.gmra.mxu0 %v83
    %v497 = vpop.f32.mrf.mxu0
    %v498 = vadd.f32 %v174, %v497
    %v499 = vpop.f32.mrf.mxu0
    %500 = vmatprep.mubr.f32.mxu0 0.0
    %501 = vmatmul.mubr.f32.gmra.mxu0 %v84
    %v502 = vpop.f32.mrf.mxu0
    %v503 = vadd.f32 %v174, %v502
    %v504 = vpop.f32.mrf.mxu0
    %505 = vmatprep.mubr.f32.mxu0 0.0
    %506 = vmatmul.mubr.f32.gmra.mxu0 %v85
    %v507 = vpop.f32.mrf.mxu0
    %v508 = vadd.f32 %v174, %v507
    %v509 = vpop.f32.mrf.mxu0
    %510 = vmatprep.mubr.f32.mxu0 0.0
    %511 = vmatmul.mubr.f32.gmra.mxu0 %v86
    %v512 = vpop.f32.mrf.mxu0
    %v513 = vadd.f32 %v174, %v512
    %v514 = vpop.f32.mrf.mxu0
    %515 = vmatprep.mubr.f32.mxu0 0.0
    %516 = vmatmul.mubr.f32.gmra.mxu0 %v87
    %v517 = vpop.f32.mrf.mxu0
    %v518 = vadd.f32 %v174, %v517
    %v519 = vpop.f32.mrf.mxu0
    %520 = vmatprep.mubr.f32.mxu0 0.0
    %521 = vmatmul.mubr.f32.gmra.mxu0 %v88
    %v522 = vpop.f32.mrf.mxu0
    %v523 = vadd.f32 %v174, %v522
    %v524 = vpop.f32.mrf.mxu0
    %525 = vmatprep.mubr.f32.mxu0 0.0
    %526 = vmatmul.mubr.f32.gmra.mxu0 %v89
    %v527 = vpop.f32.mrf.mxu0
    %v528 = vadd.f32 %v174, %v527
    %v529 = vpop.f32.mrf.mxu0
    %530 = vmatprep.mubr.f32.mxu0 0.0
    %531 = vmatmul.mubr.f32.gmra.mxu0 %v90
    %v532 = vpop.f32.mrf.mxu0
    %v533 = vadd.f32 %v174, %v532
    %v534 = vpop.f32.mrf.mxu0
    %535 = vmatprep.mubr.f32.mxu0 0.0
    %536 = vmatmul.mubr.f32.gmra.mxu0 %v91
    %v537 = vpop.f32.mrf.mxu0
    %v538 = vadd.f32 %v174, %v537
    %v539 = vpop.f32.mrf.mxu0
    %540 = vmatprep.mubr.f32.mxu0 0.0
    %541 = vmatmul.mubr.f32.gmra.mxu0 %v92
    %v542 = vpop.f32.mrf.mxu0
    %v543 = vadd.f32 %v174, %v542
    %v544 = vpop.f32.mrf.mxu0
    %545 = vmatprep.mubr.f32.mxu0 0.0
    %546 = vmatmul.mubr.f32.gmra.mxu0 %v93
    %v547 = vpop.f32.mrf.mxu0
    %v548 = vadd.f32 %v174, %v547
    %v549 = vpop.f32.mrf.mxu0
    %550 = vmatprep.mubr.f32.mxu0 0.0
    %551 = vmatmul.mubr.f32.gmra.mxu0 %v94
    %v552 = vpop.f32.mrf.mxu0
    %v553 = vadd.f32 %v174, %v552
    %v554 = vpop.f32.mrf.mxu0
    %555 = vmatprep.mubr.f32.mxu0 0.0
    %556 = vmatmul.mubr.f32.gmra.mxu0 %v95
    %v557 = vpop.f32.mrf.mxu0
    %v558 = vadd.f32 %v174, %v557
    %v559 = vpop.f32.mrf.mxu0
    %560 = vmatprep.mubr.f32.mxu0 0.0
    %561 = vmatmul.mubr.f32.gmra.mxu0 %v96
    %v562 = vpop.f32.mrf.mxu0
    %v563 = vadd.f32 %v174, %v562
    %v564 = vpop.f32.mrf.mxu0
    %565 = vmatprep.mubr.f32.mxu0 0.0
    %566 = vmatmul.mubr.f32.gmra.mxu0 %v97
    %v567 = vpop.f32.mrf.mxu0
    %v568 = vadd.f32 %v174, %v567
    %v569 = vpop.f32.mrf.mxu0
    %570 = vmatprep.mubr.f32.mxu0 0.0
    %571 = vmatmul.mubr.f32.gmra.mxu0 %v98
    %v572 = vpop.f32.mrf.mxu0
    %v573 = vadd.f32 %v174, %v572
    %v574 = vpop.f32.mrf.mxu0
    %575 = vmatprep.mubr.f32.mxu0 0.0
    %576 = vmatmul.mubr.f32.gmra.mxu0 %v99
    %v577 = vpop.f32.mrf.mxu0
    %v578 = vadd.f32 %v174, %v577
    %v579 = vpop.f32.mrf.mxu0
    %580 = vmatprep.mubr.f32.mxu0 0.0
    %581 = vmatmul.mubr.f32.gmra.mxu0 %v100
    %v582 = vpop.f32.mrf.mxu0
    %v583 = vadd.f32 %v174, %v582
    %v584 = vpop.f32.mrf.mxu0
    %585 = vmatprep.mubr.f32.mxu0 0.0
    %586 = vmatmul.mubr.f32.gmra.mxu0 %v101
    %v587 = vpop.f32.mrf.mxu0
    %v588 = vadd.f32 %v174, %v587
    %v589 = vpop.f32.mrf.mxu0
    %590 = vmatprep.mubr.f32.mxu0 0.0
    %591 = vmatmul.mubr.f32.gmra.mxu0 %v102
    %v592 = vpop.f32.mrf.mxu0
    %v593 = vadd.f32 %v174, %v592
    %v594 = vpop.f32.mrf.mxu0
    %595 = vmatprep.mubr.f32.mxu0 0.0
    %596 = vmatmul.mubr.f32.gmra.mxu0 %v103
    %v597 = vpop.f32.mrf.mxu0
    %v598 = vadd.f32 %v174, %v597
    %v599 = vpop.f32.mrf.mxu0
    %600 = vmatprep.mubr.f32.mxu0 0.0
    %601 = vmatmul.mubr.f32.gmra.mxu0 %v104
    %v602 = vpop.f32.mrf.mxu0
    %v603 = vadd.f32 %v174, %v602
    %v604 = vpop.f32.mrf.mxu0
    %605 = vmatprep.mubr.f32.mxu0 0.0
    %606 = vmatmul.mubr.f32.gmra.mxu0 %v105
    %v607 = vpop.f32.mrf.mxu0
    %v608 = vadd.f32 %v174, %v607
    %v609 = vpop.f32.mrf.mxu0
    %610 = vmatprep.mubr.f32.mxu0 0.0
    %611 = vmatmul.mubr.f32.gmra.mxu0 %v106
    %v612 = vpop.f32.mrf.mxu0
    %v613 = vadd.f32 %v174, %v612
    %v614 = vpop.f32.mrf.mxu0
    %615 = vmatprep.mubr.f32.mxu0 0.0
    %616 = vmatmul.mubr.f32.gmra.mxu0 %v107
    %v617 = vpop.f32.mrf.mxu0
    %v618 = vadd.f32 %v174, %v617
    %v619 = vpop.f32.mrf.mxu0
    %620 = vmatprep.mubr.f32.mxu0 0.0
    %621 = vmatmul.mubr.f32.gmra.mxu0 %v108
    %v622 = vpop.f32.mrf.mxu0
    %v623 = vadd.f32 %v174, %v622
    %v624 = vpop.f32.mrf.mxu0
    %625 = vmatprep.mubr.f32.mxu0 0.0
    %626 = vmatmul.mubr.f32.gmra.mxu0 %v109
    %v627 = vpop.f32.mrf.mxu0
    %v628 = vadd.f32 %v174, %v627
    %v629 = vpop.f32.mrf.mxu0
    %630 = vmatprep.mubr.f32.mxu0 0.0
    %631 = vmatmul.mubr.f32.gmra.mxu0 %v110
    %v632 = vpop.f32.mrf.mxu0
    %v633 = vadd.f32 %v174, %v632
    %v634 = vpop.f32.mrf.mxu0
    %635 = vmatprep.mubr.f32.mxu0 0.0
    %636 = vmatmul.mubr.f32.gmra.mxu0 %v111
    %v637 = vpop.f32.mrf.mxu0
    %v638 = vadd.f32 %v174, %v637
    %v639 = vpop.f32.mrf.mxu0
    %640 = vmatprep.mubr.f32.mxu0 0.0
    %641 = vmatmul.mubr.f32.gmra.mxu0 %v112
    %v642 = vpop.f32.mrf.mxu0
    %v643 = vadd.f32 %v174, %v642
    %v644 = vpop.f32.mrf.mxu0
    %645 = vdwg.mxu0
    %646 = vmatprep.subr.mxu0 0.0
    %647 = vmatpush1.msra.mxu0 %v331
    %648 = vmatprep.subr.mxu0 0.0
    %649 = vmatpush1.msra.mxu0 %v326
    %650 = vmatprep.subr.mxu0 0.0
    %651 = vmatpush1.msra.mxu0 %v321
    %652 = vmatprep.subr.mxu0 0.0
    %653 = vmatpush1.msra.mxu0 %v316
    %654 = vmatprep.subr.mxu0 0.0
    %655 = vmatpush1.msra.mxu0 %v311
    %656 = vmatprep.subr.mxu0 0.0
    %657 = vmatpush1.msra.mxu0 %v306
    %658 = vmatprep.subr.mxu0 0.0
    %659 = vmatpush1.msra.mxu0 %v301
    %660 = vmatprep.subr.mxu0 0.0
    %661 = vmatpush1.msra.mxu0 %v296
    %662 = vmatprep.subr.mxu0 0.0
    %663 = vmatpush1.msra.mxu0 %v291
    %664 = vmatprep.subr.mxu0 0.0
    %665 = vmatpush1.msra.mxu0 %v286
    %666 = vmatprep.subr.mxu0 0.0
    %667 = vmatpush1.msra.mxu0 %v281
    %668 = vmatprep.subr.mxu0 0.0
    %669 = vmatpush1.msra.mxu0 %v276
    %670 = vmatprep.subr.mxu0 0.0
    %671 = vmatpush1.msra.mxu0 %v271
    %672 = vmatprep.subr.mxu0 0.0
    %673 = vmatpush1.msra.mxu0 %v266
    %674 = vmatprep.subr.mxu0 0.0
    %675 = vmatpush1.msra.mxu0 %v261
    %676 = vmatprep.subr.mxu0 0.0
    %677 = vmatpush1.msra.mxu0 %v256
    %678 = vmatprep.subr.mxu0 0.0
    %679 = vmatpush2.msra.mxu0 0.0
    %680 = vmatprep.subr.mxu0 0.0
    %681 = vmatpush2.msra.mxu0 0.0
    %682 = vmatprep.subr.mxu0 0.0
    %683 = vmatpush2.msra.mxu0 0.0
    %684 = vmatprep.subr.mxu0 0.0
    %685 = vmatpush2.msra.mxu0 0.0
    %686 = vmatprep.subr.mxu0 0.0
    %687 = vmatpush2.msra.mxu0 0.0
    %688 = vmatprep.subr.mxu0 0.0
    %689 = vmatpush2.msra.mxu0 0.0
    %690 = vmatprep.subr.mxu0 0.0
    %691 = vmatpush2.msra.mxu0 0.0
    %692 = vmatprep.subr.mxu0 0.0
    %693 = vmatpush2.msra.mxu0 0.0
    %694 = vmatprep.subr.mxu0 0.0
    %695 = vmatpush2.msra.mxu0 0.0
    %696 = vmatprep.subr.mxu0 0.0
    %697 = vmatpush2.msra.mxu0 0.0
    %698 = vmatprep.subr.mxu0 0.0
    %699 = vmatpush2.msra.mxu0 0.0
    %700 = vmatprep.subr.mxu0 0.0
    %701 = vmatpush2.msra.mxu0 0.0
    %702 = vmatprep.subr.mxu0 0.0
    %703 = vmatpush2.msra.mxu0 0.0
    %704 = vmatprep.subr.mxu0 0.0
    %705 = vmatpush2.msra.mxu0 0.0
    %706 = vmatprep.subr.mxu0 0.0
    %707 = vmatpush2.msra.mxu0 0.0
    %708 = vmatprep.subr.mxu0 0.0
    %709 = vmatpush2.msra.mxu0 0.0
    %710 = vmatprep.mubr.f32.mxu0 0.0
    %711 = vmatmul.mubr.f32.gmra.mxu0 %v245
    %v712 = vpop.f32.mrf.mxu0
    %v713 = vadd.f32 0.0, %v712
    %v714 = vpop.f32.mrf.mxu0
    %715 = vdwg.mxu0
    %716 = vmatprep.subr.mxu0 0.0
    %717 = vmatpush1.msra.mxu0 %v411
    %718 = vmatprep.subr.mxu0 0.0
    %719 = vmatpush1.msra.mxu0 %v406
    %720 = vmatprep.subr.mxu0 0.0
    %721 = vmatpush1.msra.mxu0 %v401
    %722 = vmatprep.subr.mxu0 0.0
    %723 = vmatpush1.msra.mxu0 %v396
    %724 = vmatprep.subr.mxu0 0.0
    %725 = vmatpush1.msra.mxu0 %v391
    %726 = vmatprep.subr.mxu0 0.0
    %727 = vmatpush1.msra.mxu0 %v386
    %728 = vmatprep.subr.mxu0 0.0
    %729 = vmatpush1.msra.mxu0 %v381
    %730 = vmatprep.subr.mxu0 0.0
    %731 = vmatpush1.msra.mxu0 %v376
    %732 = vmatprep.subr.mxu0 0.0
    %733 = vmatpush1.msra.mxu0 %v371
    %734 = vmatprep.subr.mxu0 0.0
    %735 = vmatpush1.msra.mxu0 %v366
    %736 = vmatprep.subr.mxu0 0.0
    %737 = vmatpush1.msra.mxu0 %v361
    %738 = vmatprep.subr.mxu0 0.0
    %739 = vmatpush1.msra.mxu0 %v356
    %740 = vmatprep.subr.mxu0 0.0
    %741 = vmatpush1.msra.mxu0 %v351
    %742 = vmatprep.subr.mxu0 0.0
    %743 = vmatpush1.msra.mxu0 %v346
    %744 = vmatprep.subr.mxu0 0.0
    %745 = vmatpush1.msra.mxu0 %v341
    %746 = vmatprep.subr.mxu0 0.0
    %747 = vmatpush1.msra.mxu0 %v336
    %748 = vmatprep.subr.mxu0 0.0
    %749 = vmatpush2.msra.mxu0 0.0
    %750 = vmatprep.subr.mxu0 0.0
    %751 = vmatpush2.msra.mxu0 0.0
    %752 = vmatprep.subr.mxu0 0.0
    %753 = vmatpush2.msra.mxu0 0.0
    %754 = vmatprep.subr.mxu0 0.0
    %755 = vmatpush2.msra.mxu0 0.0
    %756 = vmatprep.subr.mxu0 0.0
    %757 = vmatpush2.msra.mxu0 0.0
    %758 = vmatprep.subr.mxu0 0.0
    %759 = vmatpush2.msra.mxu0 0.0
    %760 = vmatprep.subr.mxu0 0.0
    %761 = vmatpush2.msra.mxu0 0.0
    %762 = vmatprep.subr.mxu0 0.0
    %763 = vmatpush2.msra.mxu0 0.0
    %764 = vmatprep.subr.mxu0 0.0
    %765 = vmatpush2.msra.mxu0 0.0
    %766 = vmatprep.subr.mxu0 0.0
    %767 = vmatpush2.msra.mxu0 0.0
    %768 = vmatprep.subr.mxu0 0.0
    %769 = vmatpush2.msra.mxu0 0.0
    %770 = vmatprep.subr.mxu0 0.0
    %771 = vmatpush2.msra.mxu0 0.0
    %772 = vmatprep.subr.mxu0 0.0
    %773 = vmatpush2.msra.mxu0 0.0
    %774 = vmatprep.subr.mxu0 0.0
    %775 = vmatpush2.msra.mxu0 0.0
    %776 = vmatprep.subr.mxu0 0.0
    %777 = vmatpush2.msra.mxu0 0.0
    %778 = vmatprep.subr.mxu0 0.0
    %779 = vmatpush2.msra.mxu0 0.0
    %780 = vmatprep.mubr.f32.mxu0 0.0
    %781 = vmatmul.mubr.f32.gmra.mxu0 %v250
    %v782 = vpop.f32.mrf.mxu0
    %v783 = vadd.f32 0.0, %v782
    %v784 = vpop.f32.mrf.mxu0
    %785 = vdwg.mxu0
    %786 = vmax.xlane.f32.xlu0 %v713
    %v787 = vpop.xlane.xlu0 %786
    %788 = vmax.xlane.f32.xlu0 %v783
    %v789 = vpop.xlane.xlu0 %788
    %v790 = vsub.f32 %v713, %v787
    %v791 = vsub.f32 %v783, %v789
    %v792 = vmul.f32 %v790, 1.442695
    %v793 = vpow.pop %v792
    %v794 = vmul.f32 %v791, 1.442695
    %v795 = vpow.pop %v794
    %796 = vadd.xlane.f32.xlu0 %v793
    %v797 = vpop.xlane.xlu0 %796
    %798 = vadd.xlane.f32.xlu0 %v795
    %v799 = vpop.xlane.xlu0 %798
    %v800 = vrcp.pop %v797
    %v801 = vmul.f32 %v793, %v800
    %v802 = vrcp.pop %v799
    %v803 = vmul.f32 %v795, %v802
    %804 = vmatprep.subr.mxu0 0.0
    %805 = vmatpush1.msra.mxu0 %v563
    %806 = vmatprep.subr.mxu0 0.0
    %807 = vmatpush1.msra.mxu0 %v558
    %808 = vmatprep.subr.mxu0 0.0
    %809 = vmatpush1.msra.mxu0 %v553
    %810 = vmatprep.subr.mxu0 0.0
    %811 = vmatpush1.msra.mxu0 %v548
    %812 = vmatprep.subr.mxu0 0.0
    %813 = vmatpush1.msra.mxu0 %v543
    %814 = vmatprep.subr.mxu0 0.0
    %815 = vmatpush1.msra.mxu0 %v538
    %816 = vmatprep.subr.mxu0 0.0
    %817 = vmatpush1.msra.mxu0 %v533
    %818 = vmatprep.subr.mxu0 0.0
    %819 = vmatpush1.msra.mxu0 %v528
    %820 = vmatprep.subr.mxu0 0.0
    %821 = vmatpush1.msra.mxu0 %v523
    %822 = vmatprep.subr.mxu0 0.0
    %823 = vmatpush1.msra.mxu0 %v518
    %824 = vmatprep.subr.mxu0 0.0
    %825 = vmatpush1.msra.mxu0 %v513
    %826 = vmatprep.subr.mxu0 0.0
    %827 = vmatpush1.msra.mxu0 %v508
    %828 = vmatprep.subr.mxu0 0.0
    %829 = vmatpush1.msra.mxu0 %v503
    %830 = vmatprep.subr.mxu0 0.0
    %831 = vmatpush1.msra.mxu0 %v498
    %832 = vmatprep.subr.mxu0 0.0
    %833 = vmatpush1.msra.mxu0 %v493
    %834 = vmatprep.subr.mxu0 0.0
    %835 = vmatpush1.msra.mxu0 %v488
    %836 = vmatprep.subr.mxu0 0.0
    %837 = vmatpush2.msra.mxu0 0.0
    %838 = vmatprep.subr.mxu0 0.0
    %839 = vmatpush2.msra.mxu0 0.0
    %840 = vmatprep.subr.mxu0 0.0
    %841 = vmatpush2.msra.mxu0 0.0
    %842 = vmatprep.subr.mxu0 0.0
    %843 = vmatpush2.msra.mxu0 0.0
    %844 = vmatprep.subr.mxu0 0.0
    %845 = vmatpush2.msra.mxu0 0.0
    %846 = vmatprep.subr.mxu0 0.0
    %847 = vmatpush2.msra.mxu0 0.0
    %848 = vmatprep.subr.mxu0 0.0
    %849 = vmatpush2.msra.mxu0 0.0
    %850 = vmatprep.subr.mxu0 0.0
    %851 = vmatpush2.msra.mxu0 0.0
    %852 = vmatprep.subr.mxu0 0.0
    %853 = vmatpush2.msra.mxu0 0.0
    %854 = vmatprep.subr.mxu0 0.0
    %855 = vmatpush2.msra.mxu0 0.0
    %856 = vmatprep.subr.mxu0 0.0
    %857 = vmatpush2.msra.mxu0 0.0
    %858 = vmatprep.subr.mxu0 0.0
    %859 = vmatpush2.msra.mxu0 0.0
    %860 = vmatprep.subr.mxu0 0.0
    %861 = vmatpush2.msra.mxu0 0.0
    %862 = vmatprep.subr.mxu0 0.0
    %863 = vmatpush2.msra.mxu0 0.0
    %864 = vmatprep.subr.mxu0 0.0
    %865 = vmatpush2.msra.mxu0 0.0
    %866 = vmatprep.subr.mxu0 0.0
    %867 = vmatpush2.msra.mxu0 0.0
    %868 = vmatprep.mubr.f32.mxu0 0.0
    %869 = vmatmul.mubr.f32.gmra.mxu0 %v801
    %v870 = vpop.f32.mrf.mxu0
    %v871 = vadd.f32 0.0, %v870
    %v872 = vpop.f32.mrf.mxu0
    %873 = vdwg.mxu0
    %874 = vmatprep.subr.mxu0 0.0
    %875 = vmatpush1.msra.mxu0 %v643
    %876 = vmatprep.subr.mxu0 0.0
    %877 = vmatpush1.msra.mxu0 %v638
    %878 = vmatprep.subr.mxu0 0.0
    %879 = vmatpush1.msra.mxu0 %v633
    %880 = vmatprep.subr.mxu0 0.0
    %881 = vmatpush1.msra.mxu0 %v628
    %882 = vmatprep.subr.mxu0 0.0
    %883 = vmatpush1.msra.mxu0 %v623
    %884 = vmatprep.subr.mxu0 0.0
    %885 = vmatpush1.msra.mxu0 %v618
    %886 = vmatprep.subr.mxu0 0.0
    %887 = vmatpush1.msra.mxu0 %v613
    %888 = vmatprep.subr.mxu0 0.0
    %889 = vmatpush1.msra.mxu0 %v608
    %890 = vmatprep.subr.mxu0 0.0
    %891 = vmatpush1.msra.mxu0 %v603
    %892 = vmatprep.subr.mxu0 0.0
    %893 = vmatpush1.msra.mxu0 %v598
    %894 = vmatprep.subr.mxu0 0.0
    %895 = vmatpush1.msra.mxu0 %v593
    %896 = vmatprep.subr.mxu0 0.0
    %897 = vmatpush1.msra.mxu0 %v588
    %898 = vmatprep.subr.mxu0 0.0
    %899 = vmatpush1.msra.mxu0 %v583
    %900 = vmatprep.subr.mxu0 0.0
    %901 = vmatpush1.msra.mxu0 %v578
    %902 = vmatprep.subr.mxu0 0.0
    %903 = vmatpush1.msra.mxu0 %v573
    %904 = vmatprep.subr.mxu0 0.0
    %905 = vmatpush1.msra.mxu0 %v568
    %906 = vmatprep.subr.mxu0 0.0
    %907 = vmatpush2.msra.mxu0 0.0
    %908 = vmatprep.subr.mxu0 0.0
    %909 = vmatpush2.msra.mxu0 0.0
    %910 = vmatprep.subr.mxu0 0.0
    %911 = vmatpush2.msra.mxu0 0.0
    %912 = vmatprep.subr.mxu0 0.0
    %913 = vmatpush2.msra.mxu0 0.0
    %914 = vmatprep.subr.mxu0 0.0
    %915 = vmatpush2.msra.mxu0 0.0
    %916 = vmatprep.subr.mxu0 0.0
    %917 = vmatpush2.msra.mxu0 0.0
    %918 = vmatprep.subr.mxu0 0.0
    %919 = vmatpush2.msra.mxu0 0.0
    %920 = vmatprep.subr.mxu0 0.0
    %921 = vmatpush2.msra.mxu0 0.0
    %922 = vmatprep.subr.mxu0 0.0
    %923 = vmatpush2.msra.mxu0 0.0
    %924 = vmatprep.subr.mxu0 0.0
    %925 = vmatpush2.msra.mxu0 0.0
    %926 = vmatprep.subr.mxu0 0.0
    %927 = vmatpush2.msra.mxu0 0.0
    %928 = vmatprep.subr.mxu0 0.0
    %929 = vmatpush2.msra.mxu0 0.0
    %930 = vmatprep.subr.mxu0 0.0
    %931 = vmatpush2.msra.mxu0 0.0
    %932 = vmatprep.subr.mxu0 0.0
    %933 = vmatpush2.msra.mxu0 0.0
    %934 = vmatprep.subr.mxu0 0.0
    %935 = vmatpush2.msra.mxu0 0.0
    %936 = vmatprep.subr.mxu0 0.0
    %937 = vmatpush2.msra.mxu0 0.0
    %938 = vmatprep.mubr.f32.mxu0 0.0
    %939 = vmatmul.mubr.f32.gmra.mxu0 %v803
    %v940 = vpop.f32.mrf.mxu0
    %v941 = vadd.f32 0.0, %v940
    %v942 = vpop.f32.mrf.mxu0
    %943 = vdwg.mxu0
    %v944 = vld [vmem:[#allocation8] sm:$0xff]
    %v945 = vld [vmem:[#allocation8 + $0x8] sm:$0xff]
    %v946 = vld [vmem:[#allocation8 + $0x10] sm:$0xff]
    %v947 = vld [vmem:[#allocation8 + $0x18] sm:$0xff]
    %v948 = vld [vmem:[#allocation8 + $0x20] sm:$0xff]
    %v949 = vld [vmem:[#allocation8 + $0x28] sm:$0xff]
    %v950 = vld [vmem:[#allocation8 + $0x30] sm:$0xff]
    %v951 = vld [vmem:[#allocation8 + $0x38] sm:$0xff]
    %v952 = vld [vmem:[#allocation8 + $0x40] sm:$0xff]
    %v953 = vld [vmem:[#allocation8 + $0x48] sm:$0xff]
    %v954 = vld [vmem:[#allocation8 + $0x50] sm:$0xff]
    %v955 = vld [vmem:[#allocation8 + $0x58] sm:$0xff]
    %v956 = vld [vmem:[#allocation8 + $0x60] sm:$0xff]
    %v957 = vld [vmem:[#allocation8 + $0x68] sm:$0xff]
    %v958 = vld [vmem:[#allocation8 + $0x70] sm:$0xff]
    %v959 = vld [vmem:[#allocation8 + $0x78] sm:$0xff]
    %v960 = vld [vmem:[%s5] sm:$0x1]
    %v962 = vlaneseq
    %v963 = vshrl.u32 %v962, 7
    %v964 = vsub.s32 0, %v963
    %v965 = vrot.slane %v960, %v964
    %967 = vmatprep.subr.mxu0 0.0
    %968 = vmatpush1.msra.mxu0 %v959
    %969 = vmatprep.subr.mxu0 0.0
    %970 = vmatpush1.msra.mxu0 %v958
    %971 = vmatprep.subr.mxu0 0.0
    %972 = vmatpush1.msra.mxu0 %v957
    %973 = vmatprep.subr.mxu0 0.0
    %974 = vmatpush1.msra.mxu0 %v956
    %975 = vmatprep.subr.mxu0 0.0
    %976 = vmatpush1.msra.mxu0 %v955
    %977 = vmatprep.subr.mxu0 0.0
    %978 = vmatpush1.msra.mxu0 %v954
    %979 = vmatprep.subr.mxu0 0.0
    %980 = vmatpush1.msra.mxu0 %v953
    %981 = vmatprep.subr.mxu0 0.0
    %982 = vmatpush1.msra.mxu0 %v952
    %983 = vmatprep.subr.mxu0 0.0
    %984 = vmatpush1.msra.mxu0 %v951
    %985 = vmatprep.subr.mxu0 0.0
    %986 = vmatpush1.msra.mxu0 %v950
    %987 = vmatprep.subr.mxu0 0.0
    %988 = vmatpush1.msra.mxu0 %v949
    %989 = vmatprep.subr.mxu0 0.0
    %990 = vmatpush1.msra.mxu0 %v948
    %991 = vmatprep.subr.mxu0 0.0
    %992 = vmatpush1.msra.mxu0 %v947
    %993 = vmatprep.subr.mxu0 0.0
    %994 = vmatpush1.msra.mxu0 %v946
    %995 = vmatprep.subr.mxu0 0.0
    %996 = vmatpush1.msra.mxu0 %v945
    %997 = vmatprep.subr.mxu0 0.0
    %998 = vmatpush1.msra.mxu0 %v944
    %999 = vmatprep.subr.mxu0 0.0
    %1000 = vmatpush2.msra.mxu0 0.0
    %1001 = vmatprep.subr.mxu0 0.0
    %1002 = vmatpush2.msra.mxu0 0.0
    %1003 = vmatprep.subr.mxu0 0.0
    %1004 = vmatpush2.msra.mxu0 0.0
    %1005 = vmatprep.subr.mxu0 0.0
    %1006 = vmatpush2.msra.mxu0 0.0
    %1007 = vmatprep.subr.mxu0 0.0
    %1008 = vmatpush2.msra.mxu0 0.0
    %1009 = vmatprep.subr.mxu0 0.0
    %1010 = vmatpush2.msra.mxu0 0.0
    %1011 = vmatprep.subr.mxu0 0.0
    %1012 = vmatpush2.msra.mxu0 0.0
    %1013 = vmatprep.subr.mxu0 0.0
    %1014 = vmatpush2.msra.mxu0 0.0
    %1015 = vmatprep.subr.mxu0 0.0
    %1016 = vmatpush2.msra.mxu0 0.0
    %1017 = vmatprep.subr.mxu0 0.0
    %1018 = vmatpush2.msra.mxu0 0.0
    %1019 = vmatprep.subr.mxu0 0.0
    %1020 = vmatpush2.msra.mxu0 0.0
    %1021 = vmatprep.subr.mxu0 0.0
    %1022 = vmatpush2.msra.mxu0 0.0
    %1023 = vmatprep.subr.mxu0 0.0
    %1024 = vmatpush2.msra.mxu0 0.0
    %1025 = vmatprep.subr.mxu0 0.0
    %1026 = vmatpush2.msra.mxu0 0.0
    %1027 = vmatprep.subr.mxu0 0.0
    %1028 = vmatpush2.msra.mxu0 0.0
    %1029 = vmatprep.subr.mxu0 0.0
    %1030 = vmatpush2.msra.mxu0 0.0
    %1031 = vmatprep.mubr.f32.mxu0 0.0
    %1032 = vmatmul.mubr.f32.gmra.mxu0 %v871
    %v1033 = vpop.f32.mrf.mxu0
    %v1034 = vadd.f32 %v965, %v1033
    %v1035 = vpop.f32.mrf.mxu0
    %1036 = vmatprep.mubr.f32.mxu0 0.0
    %1037 = vmatmul.mubr.f32.gmra.mxu0 %v941
    %v1038 = vpop.f32.mrf.mxu0
    %v1039 = vadd.f32 %v965, %v1038
    %v1040 = vpop.f32.mrf.mxu0
    %1041 = vdwg.mxu0
    %1042 = vst [vmem:[#allocation10] sm:$0xff] %v1034
    %1043 = vst [vmem:[#allocation10 + $0x8] sm:$0xff] %v1039
    // Predicated region
    $region42: #{tpu_custom_call.1} parent=1 // pred_check
      _
    $region43: #{tpu_custom_call.1} parent=1 // pred_check_branch
      %1045 = sbr.rel (0) target = $region45
    $region44: #{tpu_custom_call.1} parent=1 // pred_region
      %s1047 = ssub.s32 256, 256
      %1048 = vsyncadd [#allocation4], %s1047
      %s1049 = sshll.u32 [#allocation10], 4
      %s1050 = int_to_ptr.vmem [resolvable:$true] %s1049
      %1055 = dma.vmem_to_hbm [thread:$0]  %s1050, 256, %s6, [#allocation4], 128, 128, 8
    $region45: #{tpu_custom_call.1} parent=1 // pred_fallthru
      _
    // Predicated region
    $region46: #{tpu_custom_call.1} parent=1 // pred_check
      _
    $region47: #{tpu_custom_call.1} parent=1 // pred_check_branch
      %1057 = sbr.rel (0) target = $region49
    $region48: #{tpu_custom_call.1} parent=1 // pred_region
      %1058 = dma.done [#allocation4], 256
    $region49: #{tpu_custom_call.1} parent=1 // pred_fallthru
      _
    %1059 = vsyncpa [#allocation3], 1
    %1060 = vsyncpa [#allocation6], 1
    %1061 = vsyncpa [#allocation9], 1
    %1062 = vsyncpa [#allocation4], 1

// kernel: tpu_custom_call.1
$region0: #{tpu_custom_call.1}
  #allocation0 [shape = 'u32[]', space=smem, size = 0x4, offset = 0x4, fixed_abs, tag = 'smem constant byte address 0x4 - core index']
  #allocation1 [shape = 'u32[144,128]{1,0:T(1,128)}', space=vmem, size = 0x12000, scoped, tag = 'internal scratch']
  %s0 = inlined_call_operand.hbm [shape: f32[2,8,128], index: 0, kind: input, shape index: {}]
  %s1 = inlined_call_operand.hbm [shape: f32[2,128,128], index: 1, kind: input, shape index: {}]
  %s2 = inlined_call_operand.hbm [shape: f32[128,384], index: 2, kind: input, shape index: {}]
  %s3 = inlined_call_operand.vmem [shape: f32[1,384], index: 3, kind: input, shape index: {}]
  %s4 = inlined_call_operand.hbm [shape: f32[128,128], index: 4, kind: input, shape index: {}]
  %s5 = inlined_call_operand.vmem [shape: f32[1,128], index: 5, kind: input, shape index: {}]
  %s6 = inlined_call_operand.hbm [shape: f32[2,8,128], index: 6, kind: output, shape index: {}]
  %s7 = sld [smem:[#allocation0]]
  $region50: #{tpu_custom_call.1} parent=0
    _
  %s9 = ssub.s32 1, %s7
  %s10 = scalar_select 0, %s9, %s7
  $region1: #{tpu_custom_call.1} parent=0
    #allocation2 [shape = 'u8[8192]{0}', space=vmem, size = 0x2000, scoped, tag = 'input window, operand 0, single buffered']
    #allocation3 [shape = 's32[1]{0}', space=sflag, size = 0x4, scoped, tag = 'scoped memory for tpu_custom_call.1']
    #allocation4 [shape = 's32[1]{0}', space=sflag, size = 0x4, scoped, tag = 'scoped memory for tpu_custom_call.1']
    #allocation5 [shape = 'u8[131072]{0}', space=vmem, size = 0x20000, scoped, tag = 'input window, operand 1, single buffered']
    #allocation6 [shape = 's32[1]{0}', space=sflag, size = 0x4, scoped, tag = 'scoped memory for tpu_custom_call.1']
    #allocation7 [shape = 'u8[196608]{0}', space=vmem, size = 0x30000, scoped, tag = 'input window, operand 2, single buffered']
    #allocation8 [shape = 'u8[65536]{0}', space=vmem, size = 0x10000, scoped, tag = 'input window, operand 4, single buffered']
    #allocation9 [shape = 's32[1]{0}', space=sflag, size = 0x4, scoped, tag = 'scoped memory for tpu_custom_call.1']
    #allocation10 [shape = 'u8[8192]{0}', space=vmem, size = 0x2000, scoped, tag = 'output window, operand 0, single buffered']
    %11 = vsyncpa [#allocation3], 0
    %12 = vsyncpa [#allocation6], 0
    %13 = vsyncpa [#allocation9], 0
    %14 = vsyncpa [#allocation4], 0
    // Predicated region
    $region2: #{tpu_custom_call.1} parent=1 // pred_check
      _
    $region3: #{tpu_custom_call.1} parent=1 // pred_check_branch
      %16 = sbr.rel (0) target = $region5
    $region4: #{tpu_custom_call.1} parent=1 // pred_region
      %s18 = ssub.s32 256, 256
      %19 = vsyncadd [#allocation3], %s18
      %s20 = sshll.u32 [#allocation2], 4
      %s21 = int_to_ptr.vmem [resolvable:$true] %s20
      %26 = dma.hbm_to_vmem [thread:$0]  %s0, 256, %s21, [#allocation3], 128, 128, 8
    $region5: #{tpu_custom_call.1} parent=1 // pred_fallthru
      _
    // Predicated region
    $region6: #{tpu_custom_call.1} parent=1 // pred_check
      _
    $region7: #{tpu_custom_call.1} parent=1 // pred_check_branch
      %28 = sbr.rel (0) target = $region9
    $region8: #{tpu_custom_call.1} parent=1 // pred_region
      %s30 = ssub.s32 4096, 4096
      %31 = vsyncadd [#allocation6], %s30
      %s32 = sshll.u32 [#allocation5], 4
      %s33 = int_to_ptr.vmem [resolvable:$true] %s32
      %38 = dma.hbm_to_vmem [thread:$0]  %s1, 4096, %s33, [#allocation6], 128, 128, 8
    $region9: #{tpu_custom_call.1} parent=1 // pred_fallthru
      _
    // Predicated region
    $region10: #{tpu_custom_call.1} parent=1 // pred_check
      _
    $region11: #{tpu_custom_call.1} parent=1 // pred_check_branch
      %40 = sbr.rel (0) target = $region13
    $region12: #{tpu_custom_call.1} parent=1 // pred_region
      %s42 = ssub.s32 6144, 6144
      %43 = vsyncadd [#allocation6], %s42
      %s44 = sshll.u32 [#allocation7], 4
      %s45 = int_to_ptr.vmem [resolvable:$true] %s44
      %50 = dma.hbm_to_vmem [thread:$0]  %s2, 6144, %s45, [#allocation6], 384, 384, 24
    $region13: #{tpu_custom_call.1} parent=1 // pred_fallthru
      _
    // Predicated region
    $region14: #{tpu_custom_call.1} parent=1 // pred_check
      _
    $region15: #{tpu_custom_call.1} parent=1 // pred_check_branch
      %52 = sbr.rel (0) target = $region17
    $region16: #{tpu_custom_call.1} parent=1 // pred_region
      _
    $region17: #{tpu_custom_call.1} parent=1 // pred_fallthru
      _
    // Predicated region
    $region18: #{tpu_custom_call.1} parent=1 // pred_check
      _
    $region19: #{tpu_custom_call.1} parent=1 // pred_check_branch
      %54 = sbr.rel (0) target = $region21
    $region20: #{tpu_custom_call.1} parent=1 // pred_region
      %s56 = ssub.s32 2048, 2048
      %57 = vsyncadd [#allocation9], %s56
      %s58 = sshll.u32 [#allocation8], 4
      %s59 = int_to_ptr.vmem [resolvable:$true] %s58
      %64 = dma.hbm_to_vmem [thread:$0]  %s4, 2048, %s59, [#allocation9], 128, 128, 8
    $region21: #{tpu_custom_call.1} parent=1 // pred_fallthru
      _
    // Predicated region
    $region22: #{tpu_custom_call.1} parent=1 // pred_check
      _
    $region23: #{tpu_custom_call.1} parent=1 // pred_check_branch
      %66 = sbr.rel (0) target = $region25
    $region24: #{tpu_custom_call.1} parent=1 // pred_region
      _
    $region25: #{tpu_custom_call.1} parent=1 // pred_fallthru
      _
    // Predicated region
    $region26: #{tpu_custom_call.1} parent=1 // pred_check
      _
    $region27: #{tpu_custom_call.1} parent=1 // pred_check_branch
      %68 = sbr.rel (0) target = $region29
    $region28: #{tpu_custom_call.1} parent=1 // pred_region
      %69 = dma.done [#allocation3], 256
    $region29: #{tpu_custom_call.1} parent=1 // pred_fallthru
      _
    // Predicated region
    $region30: #{tpu_custom_call.1} parent=1 // pred_check
      _
    $region31: #{tpu_custom_call.1} parent=1 // pred_check_branch
      %71 = sbr.rel (0) target = $region33
    $region32: #{tpu_custom_call.1} parent=1 // pred_region
      %72 = dma.done [#allocation6], 4096
    $region33: #{tpu_custom_call.1} parent=1 // pred_fallthru
      _
    // Predicated region
    $region34: #{tpu_custom_call.1} parent=1 // pred_check
      _
    $region35: #{tpu_custom_call.1} parent=1 // pred_check_branch
      %74 = sbr.rel (0) target = $region37
    $region36: #{tpu_custom_call.1} parent=1 // pred_region
      %75 = dma.done [#allocation6], 6144
    $region37: #{tpu_custom_call.1} parent=1 // pred_fallthru
      _
    // Predicated region
    $region38: #{tpu_custom_call.1} parent=1 // pred_check
      _
    $region39: #{tpu_custom_call.1} parent=1 // pred_check_branch
      %77 = sbr.rel (0) target = $region41
    $region40: #{tpu_custom_call.1} parent=1 // pred_region
      %78 = dma.done [#allocation9], 2048
    $region41: #{tpu_custom_call.1} parent=1 // pred_fallthru
      _
    %v79 = vld [vmem:[#allocation2] sm:$0xff]
    %v80 = vld [vmem:[#allocation2 + $0x8] sm:$0xff]
    %v81 = vld [vmem:[#allocation5] sm:$0xff]
    %v82 = vld [vmem:[#allocation5 + $0x8] sm:$0xff]
    %v83 = vld [vmem:[#allocation5 + $0x10] sm:$0xff]
    %v84 = vld [vmem:[#allocation5 + $0x18] sm:$0xff]
    %v85 = vld [vmem:[#allocation5 + $0x20] sm:$0xff]
    %v86 = vld [vmem:[#allocation5 + $0x28] sm:$0xff]
    %v87 = vld [vmem:[#allocation5 + $0x30] sm:$0xff]
    %v88 = vld [vmem:[#allocation5 + $0x38] sm:$0xff]
    %v89 = vld [vmem:[#allocation5 + $0x40] sm:$0xff]
    %v90 = vld [vmem:[#allocation5 + $0x48] sm:$0xff]
    %v91 = vld [vmem:[#allocation5 + $0x50] sm:$0xff]
    %v92 = vld [vmem:[#allocation5 + $0x58] sm:$0xff]
    %v93 = vld [vmem:[#allocation5 + $0x60] sm:$0xff]
    %v94 = vld [vmem:[#allocation5 + $0x68] sm:$0xff]
    %v95 = vld [vmem:[#allocation5 + $0x70] sm:$0xff]
    %v96 = vld [vmem:[#allocation5 + $0x78] sm:$0xff]
    %v97 = vld [vmem:[#allocation5 + $0x80] sm:$0xff]
    %v98 = vld [vmem:[#allocation5 + $0x88] sm:$0xff]
    %v99 = vld [vmem:[#allocation5 + $0x90] sm:$0xff]
    %v100 = vld [vmem:[#allocation5 + $0x98] sm:$0xff]
    %v101 = vld [vmem:[#allocation5 + $0xa0] sm:$0xff]
    %v102 = vld [vmem:[#allocation5 + $0xa8] sm:$0xff]
    %v103 = vld [vmem:[#allocation5 + $0xb0] sm:$0xff]
    %v104 = vld [vmem:[#allocation5 + $0xb8] sm:$0xff]
    %v105 = vld [vmem:[#allocation5 + $0xc0] sm:$0xff]
    %v106 = vld [vmem:[#allocation5 + $0xc8] sm:$0xff]
    %v107 = vld [vmem:[#allocation5 + $0xd0] sm:$0xff]
    %v108 = vld [vmem:[#allocation5 + $0xd8] sm:$0xff]
    %v109 = vld [vmem:[#allocation5 + $0xe0] sm:$0xff]
    %v110 = vld [vmem:[#allocation5 + $0xe8] sm:$0xff]
    %v111 = vld [vmem:[#allocation5 + $0xf0] sm:$0xff]
    %v112 = vld [vmem:[#allocation5 + $0xf8] sm:$0xff]
    %v113 = vld [vmem:[#allocation7] sm:$0xff]
    %v114 = vld [vmem:[#allocation7 + $0x8] sm:$0xff]
    %v115 = vld [vmem:[#allocation7 + $0x10] sm:$0xff]
    %v116 = vld [vmem:[#allocation7 + $0x18] sm:$0xff]
    %v117 = vld [vmem:[#allocation7 + $0x20] sm:$0xff]
    %v118 = vld [vmem:[#allocation7 + $0x28] sm:$0xff]
    %v119 = vld [vmem:[#allocation7 + $0x30] sm:$0xff]
    %v120 = vld [vmem:[#allocation7 + $0x38] sm:$0xff]
    %v121 = vld [vmem:[#allocation7 + $0x40] sm:$0xff]
    %v122 = vld [vmem:[#allocation7 + $0x48] sm:$0xff]
    %v123 = vld [vmem:[#allocation7 + $0x50] sm:$0xff]
    %v124 = vld [vmem:[#allocation7 + $0x58] sm:$0xff]
    %v125 = vld [vmem:[#allocation7 + $0x60] sm:$0xff]
    %v126 = vld [vmem:[#allocation7 + $0x68] sm:$0xff]
    %v127 = vld [vmem:[#allocation7 + $0x70] sm:$0xff]
    %v128 = vld [vmem:[#allocation7 + $0x78] sm:$0xff]
    %v129 = vld [vmem:[#allocation7 + $0x80] sm:$0xff]
    %v130 = vld [vmem:[#allocation7 + $0x88] sm:$0xff]
    %v131 = vld [vmem:[#allocation7 + $0x90] sm:$0xff]
    %v132 = vld [vmem:[#allocation7 + $0x98] sm:$0xff]
    %v133 = vld [vmem:[#allocation7 + $0xa0] sm:$0xff]
    %v134 = vld [vmem:[#allocation7 + $0xa8] sm:$0xff]
    %v135 = vld [vmem:[#allocation7 + $0xb0] sm:$0xff]
    %v136 = vld [vmem:[#allocation7 + $0xb8] sm:$0xff]
    %v137 = vld [vmem:[#allocation7 + $0xc0] sm:$0xff]
    %v138 = vld [vmem:[#allocation7 + $0xc8] sm:$0xff]
    %v139 = vld [vmem:[#allocation7 + $0xd0] sm:$0xff]
    %v140 = vld [vmem:[#allocation7 + $0xd8] sm:$0xff]
    %v141 = vld [vmem:[#allocation7 + $0xe0] sm:$0xff]
    %v142 = vld [vmem:[#allocation7 + $0xe8] sm:$0xff]
    %v143 = vld [vmem:[#allocation7 + $0xf0] sm:$0xff]
    %v144 = vld [vmem:[#allocation7 + $0xf8] sm:$0xff]
    %v145 = vld [vmem:[#allocation7 + $0x100] sm:$0xff]
    %v146 = vld [vmem:[#allocation7 + $0x108] sm:$0xff]
    %v147 = vld [vmem:[#allocation7 + $0x110] sm:$0xff]
    %v148 = vld [vmem:[#allocation7 + $0x118] sm:$0xff]
    %v149 = vld [vmem:[#allocation7 + $0x120] sm:$0xff]
    %v150 = vld [vmem:[#allocation7 + $0x128] sm:$0xff]
    %v151 = vld [vmem:[#allocation7 + $0x130] sm:$0xff]
    %v152 = vld [vmem:[#allocation7 + $0x138] sm:$0xff]
    %v153 = vld [vmem:[#allocation7 + $0x140] sm:$0xff]
    %v154 = vld [vmem:[#allocation7 + $0x148] sm:$0xff]
    %v155 = vld [vmem:[#allocation7 + $0x150] sm:$0xff]
    %v156 = vld [vmem:[#allocation7 + $0x158] sm:$0xff]
    %v157 = vld [vmem:[#allocation7 + $0x160] sm:$0xff]
    %v158 = vld [vmem:[#allocation7 + $0x168] sm:$0xff]
    %v159 = vld [vmem:[#allocation7 + $0x170] sm:$0xff]
    %v160 = vld [vmem:[#allocation7 + $0x178] sm:$0xff]
    %v161 = vld [vmem:[%s3] sm:$0x7]
    %v163 = vlaneseq
    %v164 = vshrl.u32 %v163, 7
    %v165 = vsub.s32 0, %v164
    %v166 = vrot.slane %v161, %v165
    %v167 = vlaneseq
    %v168 = vshrl.u32 %v167, 7
    %v169 = vsub.s32 1, %v168
    %v170 = vrot.slane %v161, %v169
    %v171 = vlaneseq
    %v172 = vshrl.u32 %v171, 7
    %v173 = vsub.s32 2, %v172
    %v174 = vrot.slane %v161, %v173
    %178 = vmatprep.subr.mxu0 %v159
    %179 = vmatpush1.msra.mxu0 %v158
    %180 = vmatprep.subr.mxu0 %v156
    %181 = vmatpush1.msra.mxu0 %v155
    %182 = vmatprep.subr.mxu0 %v153
    %183 = vmatpush1.msra.mxu0 %v152
    %184 = vmatprep.subr.mxu0 %v150
    %185 = vmatpush1.msra.mxu0 %v149
    %186 = vmatprep.subr.mxu0 %v147
    %187 = vmatpush1.msra.mxu0 %v146
    %188 = vmatprep.subr.mxu0 %v144
    %189 = vmatpush1.msra.mxu0 %v143
    %190 = vmatprep.subr.mxu0 %v141
    %191 = vmatpush1.msra.mxu0 %v140
    %192 = vmatprep.subr.mxu0 %v138
    %193 = vmatpush1.msra.mxu0 %v137
    %194 = vmatprep.subr.mxu0 %v135
    %195 = vmatpush1.msra.mxu0 %v134
    %196 = vmatprep.subr.mxu0 %v132
    %197 = vmatpush1.msra.mxu0 %v131
    %198 = vmatprep.subr.mxu0 %v129
    %199 = vmatpush1.msra.mxu0 %v128
    %200 = vmatprep.subr.mxu0 %v126
    %201 = vmatpush1.msra.mxu0 %v125
    %202 = vmatprep.subr.mxu0 %v123
    %203 = vmatpush1.msra.mxu0 %v122
    %204 = vmatprep.subr.mxu0 %v120
    %205 = vmatpush1.msra.mxu0 %v119
    %206 = vmatprep.subr.mxu0 %v117
    %207 = vmatpush1.msra.mxu0 %v116
    %208 = vmatprep.subr.mxu0 %v114
    %209 = vmatpush1.msra.mxu0 %v113
    %210 = vmatprep.subr.mxu0 0.0
    %211 = vmatpush2.msra.mxu0 0.0
    %212 = vmatprep.subr.mxu0 0.0
    %213 = vmatpush2.msra.mxu0 0.0
    %214 = vmatprep.subr.mxu0 0.0
    %215 = vmatpush2.msra.mxu0 0.0
    %216 = vmatprep.subr.mxu0 0.0
    %217 = vmatpush2.msra.mxu0 0.0
    %218 = vmatprep.subr.mxu0 0.0
    %219 = vmatpush2.msra.mxu0 0.0
    %220 = vmatprep.subr.mxu0 0.0
    %221 = vmatpush2.msra.mxu0 0.0
    %222 = vmatprep.subr.mxu0 0.0
    %223 = vmatpush2.msra.mxu0 0.0
    %224 = vmatprep.subr.mxu0 0.0
    %225 = vmatpush2.msra.mxu0 0.0
    %226 = vmatprep.subr.mxu0 0.0
    %227 = vmatpush2.msra.mxu0 0.0
    %228 = vmatprep.subr.mxu0 0.0
    %229 = vmatpush2.msra.mxu0 0.0
    %230 = vmatprep.subr.mxu0 0.0
    %231 = vmatpush2.msra.mxu0 0.0
    %232 = vmatprep.subr.mxu0 0.0
    %233 = vmatpush2.msra.mxu0 0.0
    %234 = vmatprep.subr.mxu0 0.0
    %235 = vmatpush2.msra.mxu0 0.0
    %236 = vmatprep.subr.mxu0 0.0
    %237 = vmatpush2.msra.mxu0 0.0
    %238 = vmatprep.subr.mxu0 0.0
    %239 = vmatpush2.msra.mxu0 0.0
    %240 = vmatprep.subr.mxu0 0.0
    %241 = vmatpush2.msra.mxu0 0.0
    %242 = vmatprep.mubr.f32.mxu0 0.0
    %243 = vmatmul.mubr.f32.gmra.mxu0 %v79
    %v244 = vpop.f32.mrf.mxu0
    %v245 = vadd.f32 %v166, %v244
    %v246 = vpop.f32.mrf.mxu0
    %247 = vmatprep.mubr.f32.mxu0 0.0
    %248 = vmatmul.mubr.f32.gmra.mxu0 %v80
    %v249 = vpop.f32.mrf.mxu0
    %v250 = vadd.f32 %v166, %v249
    %v251 = vpop.f32.mrf.mxu0
    %252 = vmatprep.mubr.f32.mxu0 0.0
    %253 = vmatmul.mubr.f32.gmra.mxu0 %v81
    %v254 = vpop.f32.mrf.mxu0
    %v255 = vpop.f32.mrf.mxu0
    %v256 = vadd.f32 %v170, %v255
    %257 = vmatprep.mubr.f32.mxu0 0.0
    %258 = vmatmul.mubr.f32.gmra.mxu0 %v82
    %v259 = vpop.f32.mrf.mxu0
    %v260 = vpop.f32.mrf.mxu0
    %v261 = vadd.f32 %v170, %v260
    %262 = vmatprep.mubr.f32.mxu0 0.0
    %263 = vmatmul.mubr.f32.gmra.mxu0 %v83
    %v264 = vpop.f32.mrf.mxu0
    %v265 = vpop.f32.mrf.mxu0
    %v266 = vadd.f32 %v170, %v265
    %267 = vmatprep.mubr.f32.mxu0 0.0
    %268 = vmatmul.mubr.f32.gmra.mxu0 %v84
    %v269 = vpop.f32.mrf.mxu0
    %v270 = vpop.f32.mrf.mxu0
    %v271 = vadd.f32 %v170, %v270
    %272 = vmatprep.mubr.f32.mxu0 0.0
    %273 = vmatmul.mubr.f32.gmra.mxu0 %v85
    %v274 = vpop.f32.mrf.mxu0
    %v275 = vpop.f32.mrf.mxu0
    %v276 = vadd.f32 %v170, %v275
    %277 = vmatprep.mubr.f32.mxu0 0.0
    %278 = vmatmul.mubr.f32.gmra.mxu0 %v86
    %v279 = vpop.f32.mrf.mxu0
    %v280 = vpop.f32.mrf.mxu0
    %v281 = vadd.f32 %v170, %v280
    %282 = vmatprep.mubr.f32.mxu0 0.0
    %283 = vmatmul.mubr.f32.gmra.mxu0 %v87
    %v284 = vpop.f32.mrf.mxu0
    %v285 = vpop.f32.mrf.mxu0
    %v286 = vadd.f32 %v170, %v285
    %287 = vmatprep.mubr.f32.mxu0 0.0
    %288 = vmatmul.mubr.f32.gmra.mxu0 %v88
    %v289 = vpop.f32.mrf.mxu0
    %v290 = vpop.f32.mrf.mxu0
    %v291 = vadd.f32 %v170, %v290
    %292 = vmatprep.mubr.f32.mxu0 0.0
    %293 = vmatmul.mubr.f32.gmra.mxu0 %v89
    %v294 = vpop.f32.mrf.mxu0
    %v295 = vpop.f32.mrf.mxu0
    %v296 = vadd.f32 %v170, %v295
    %297 = vmatprep.mubr.f32.mxu0 0.0
    %298 = vmatmul.mubr.f32.gmra.mxu0 %v90
    %v299 = vpop.f32.mrf.mxu0
    %v300 = vpop.f32.mrf.mxu0
    %v301 = vadd.f32 %v170, %v300
    %302 = vmatprep.mubr.f32.mxu0 0.0
    %303 = vmatmul.mubr.f32.gmra.mxu0 %v91
    %v304 = vpop.f32.mrf.mxu0
    %v305 = vpop.f32.mrf.mxu0
    %v306 = vadd.f32 %v170, %v305
    %307 = vmatprep.mubr.f32.mxu0 0.0
    %308 = vmatmul.mubr.f32.gmra.mxu0 %v92
    %v309 = vpop.f32.mrf.mxu0
    %v310 = vpop.f32.mrf.mxu0
    %v311 = vadd.f32 %v170, %v310
    %312 = vmatprep.mubr.f32.mxu0 0.0
    %313 = vmatmul.mubr.f32.gmra.mxu0 %v93
    %v314 = vpop.f32.mrf.mxu0
    %v315 = vpop.f32.mrf.mxu0
    %v316 = vadd.f32 %v170, %v315
    %317 = vmatprep.mubr.f32.mxu0 0.0
    %318 = vmatmul.mubr.f32.gmra.mxu0 %v94
    %v319 = vpop.f32.mrf.mxu0
    %v320 = vpop.f32.mrf.mxu0
    %v321 = vadd.f32 %v170, %v320
    %322 = vmatprep.mubr.f32.mxu0 0.0
    %323 = vmatmul.mubr.f32.gmra.mxu0 %v95
    %v324 = vpop.f32.mrf.mxu0
    %v325 = vpop.f32.mrf.mxu0
    %v326 = vadd.f32 %v170, %v325
    %327 = vmatprep.mubr.f32.mxu0 0.0
    %328 = vmatmul.mubr.f32.gmra.mxu0 %v96
    %v329 = vpop.f32.mrf.mxu0
    %v330 = vpop.f32.mrf.mxu0
    %v331 = vadd.f32 %v170, %v330
    %332 = vmatprep.mubr.f32.mxu0 0.0
    %333 = vmatmul.mubr.f32.gmra.mxu0 %v97
    %v334 = vpop.f32.mrf.mxu0
    %v335 = vpop.f32.mrf.mxu0
    %v336 = vadd.f32 %v170, %v335
    %337 = vmatprep.mubr.f32.mxu0 0.0
    %338 = vmatmul.mubr.f32.gmra.mxu0 %v98
    %v339 = vpop.f32.mrf.mxu0
    %v340 = vpop.f32.mrf.mxu0
    %v341 = vadd.f32 %v170, %v340
    %342 = vmatprep.mubr.f32.mxu0 0.0
    %343 = vmatmul.mubr.f32.gmra.mxu0 %v99
    %v344 = vpop.f32.mrf.mxu0
    %v345 = vpop.f32.mrf.mxu0
    %v346 = vadd.f32 %v170, %v345
    %347 = vmatprep.mubr.f32.mxu0 0.0
    %348 = vmatmul.mubr.f32.gmra.mxu0 %v100
    %v349 = vpop.f32.mrf.mxu0
    %v350 = vpop.f32.mrf.mxu0
    %v351 = vadd.f32 %v170, %v350
    %352 = vmatprep.mubr.f32.mxu0 0.0
    %353 = vmatmul.mubr.f32.gmra.mxu0 %v101
    %v354 = vpop.f32.mrf.mxu0
    %v355 = vpop.f32.mrf.mxu0
    %v356 = vadd.f32 %v170, %v355
    %357 = vmatprep.mubr.f32.mxu0 0.0
    %358 = vmatmul.mubr.f32.gmra.mxu0 %v102
    %v359 = vpop.f32.mrf.mxu0
    %v360 = vpop.f32.mrf.mxu0
    %v361 = vadd.f32 %v170, %v360
    %362 = vmatprep.mubr.f32.mxu0 0.0
    %363 = vmatmul.mubr.f32.gmra.mxu0 %v103
    %v364 = vpop.f32.mrf.mxu0
    %v365 = vpop.f32.mrf.mxu0
    %v366 = vadd.f32 %v170, %v365
    %367 = vmatprep.mubr.f32.mxu0 0.0
    %368 = vmatmul.mubr.f32.gmra.mxu0 %v104
    %v369 = vpop.f32.mrf.mxu0
    %v370 = vpop.f32.mrf.mxu0
    %v371 = vadd.f32 %v170, %v370
    %372 = vmatprep.mubr.f32.mxu0 0.0
    %373 = vmatmul.mubr.f32.gmra.mxu0 %v105
    %v374 = vpop.f32.mrf.mxu0
    %v375 = vpop.f32.mrf.mxu0
    %v376 = vadd.f32 %v170, %v375
    %377 = vmatprep.mubr.f32.mxu0 0.0
    %378 = vmatmul.mubr.f32.gmra.mxu0 %v106
    %v379 = vpop.f32.mrf.mxu0
    %v380 = vpop.f32.mrf.mxu0
    %v381 = vadd.f32 %v170, %v380
    %382 = vmatprep.mubr.f32.mxu0 0.0
    %383 = vmatmul.mubr.f32.gmra.mxu0 %v107
    %v384 = vpop.f32.mrf.mxu0
    %v385 = vpop.f32.mrf.mxu0
    %v386 = vadd.f32 %v170, %v385
    %387 = vmatprep.mubr.f32.mxu0 0.0
    %388 = vmatmul.mubr.f32.gmra.mxu0 %v108
    %v389 = vpop.f32.mrf.mxu0
    %v390 = vpop.f32.mrf.mxu0
    %v391 = vadd.f32 %v170, %v390
    %392 = vmatprep.mubr.f32.mxu0 0.0
    %393 = vmatmul.mubr.f32.gmra.mxu0 %v109
    %v394 = vpop.f32.mrf.mxu0
    %v395 = vpop.f32.mrf.mxu0
    %v396 = vadd.f32 %v170, %v395
    %397 = vmatprep.mubr.f32.mxu0 0.0
    %398 = vmatmul.mubr.f32.gmra.mxu0 %v110
    %v399 = vpop.f32.mrf.mxu0
    %v400 = vpop.f32.mrf.mxu0
    %v401 = vadd.f32 %v170, %v400
    %402 = vmatprep.mubr.f32.mxu0 0.0
    %403 = vmatmul.mubr.f32.gmra.mxu0 %v111
    %v404 = vpop.f32.mrf.mxu0
    %v405 = vpop.f32.mrf.mxu0
    %v406 = vadd.f32 %v170, %v405
    %407 = vmatprep.mubr.f32.mxu0 0.0
    %408 = vmatmul.mubr.f32.gmra.mxu0 %v112
    %v409 = vpop.f32.mrf.mxu0
    %v410 = vpop.f32.mrf.mxu0
    %v411 = vadd.f32 %v170, %v410
    %412 = vdwg.mxu0
    %413 = vmatprep.subr.mxu0 0.0
    %414 = vmatpush1.msra.mxu0 %v160
    %415 = vmatprep.subr.mxu0 0.0
    %416 = vmatpush1.msra.mxu0 %v157
    %417 = vmatprep.subr.mxu0 0.0
    %418 = vmatpush1.msra.mxu0 %v154
    %419 = vmatprep.subr.mxu0 0.0
    %420 = vmatpush1.msra.mxu0 %v151
    %421 = vmatprep.subr.mxu0 0.0
    %422 = vmatpush1.msra.mxu0 %v148
    %423 = vmatprep.subr.mxu0 0.0
    %424 = vmatpush1.msra.mxu0 %v145
    %425 = vmatprep.subr.mxu0 0.0
    %426 = vmatpush1.msra.mxu0 %v142
    %427 = vmatprep.subr.mxu0 0.0
    %428 = vmatpush1.msra.mxu0 %v139
    %429 = vmatprep.subr.mxu0 0.0
    %430 = vmatpush1.msra.mxu0 %v136
    %431 = vmatprep.subr.mxu0 0.0
    %432 = vmatpush1.msra.mxu0 %v133
    %433 = vmatprep.subr.mxu0 0.0
    %434 = vmatpush1.msra.mxu0 %v130
    %435 = vmatprep.subr.mxu0 0.0
    %436 = vmatpush1.msra.mxu0 %v127
    %437 = vmatprep.subr.mxu0 0.0
    %438 = vmatpush1.msra.mxu0 %v124
    %439 = vmatprep.subr.mxu0 0.0
    %440 = vmatpush1.msra.mxu0 %v121
    %441 = vmatprep.subr.mxu0 0.0
    %442 = vmatpush1.msra.mxu0 %v118
    %443 = vmatprep.subr.mxu0 0.0
    %444 = vmatpush1.msra.mxu0 %v115
    %445 = vmatprep.subr.mxu0 0.0
    %446 = vmatpush2.msra.mxu0 0.0
    %447 = vmatprep.subr.mxu0 0.0
    %448 = vmatpush2.msra.mxu0 0.0
    %449 = vmatprep.subr.mxu0 0.0
    %450 = vmatpush2.msra.mxu0 0.0
    %451 = vmatprep.subr.mxu0 0.0
    %452 = vmatpush2.msra.mxu0 0.0
    %453 = vmatprep.subr.mxu0 0.0
    %454 = vmatpush2.msra.mxu0 0.0
    %455 = vmatprep.subr.mxu0 0.0
    %456 = vmatpush2.msra.mxu0 0.0
    %457 = vmatprep.subr.mxu0 0.0
    %458 = vmatpush2.msra.mxu0 0.0
    %459 = vmatprep.subr.mxu0 0.0
    %460 = vmatpush2.msra.mxu0 0.0
    %461 = vmatprep.subr.mxu0 0.0
    %462 = vmatpush2.msra.mxu0 0.0
    %463 = vmatprep.subr.mxu0 0.0
    %464 = vmatpush2.msra.mxu0 0.0
    %465 = vmatprep.subr.mxu0 0.0
    %466 = vmatpush2.msra.mxu0 0.0
    %467 = vmatprep.subr.mxu0 0.0
    %468 = vmatpush2.msra.mxu0 0.0
    %469 = vmatprep.subr.mxu0 0.0
    %470 = vmatpush2.msra.mxu0 0.0
    %471 = vmatprep.subr.mxu0 0.0
    %472 = vmatpush2.msra.mxu0 0.0
    %473 = vmatprep.subr.mxu0 0.0
    %474 = vmatpush2.msra.mxu0 0.0
    %475 = vmatprep.subr.mxu0 0.0
    %476 = vmatpush2.msra.mxu0 0.0
    %477 = vmatprep.mubr.f32.mxu0 0.0
    %478 = vmatmul.mubr.f32.gmra.mxu0 %v79
    %v479 = vpop.f32.mrf.mxu0
    %v480 = vpop.f32.mrf.mxu0
    %481 = vmatprep.mubr.f32.mxu0 0.0
    %482 = vmatmul.mubr.f32.gmra.mxu0 %v80
    %v483 = vpop.f32.mrf.mxu0
    %v484 = vpop.f32.mrf.mxu0
    %485 = vmatprep.mubr.f32.mxu0 0.0
    %486 = vmatmul.mubr.f32.gmra.mxu0 %v81
    %v487 = vpop.f32.mrf.mxu0
    %v488 = vadd.f32 %v174, %v487
    %v489 = vpop.f32.mrf.mxu0
    %490 = vmatprep.mubr.f32.mxu0 0.0
    %491 = vmatmul.mubr.f32.gmra.mxu0 %v82
    %v492 = vpop.f32.mrf.mxu0
    %v493 = vadd.f32 %v174, %v492
    %v494 = vpop.f32.mrf.mxu0
    %495 = vmatprep.mubr.f32.mxu0 0.0
    %496 = vmatmul.mubr.f32.gmra.mxu0 %v83
    %v497 = vpop.f32.mrf.mxu0
    %v498 = vadd.f32 %v174, %v497
    %v499 = vpop.f32.mrf.mxu0
    %500 = vmatprep.mubr.f32.mxu0 0.0
    %501 = vmatmul.mubr.f32.gmra.mxu0 %v84
    %v502 = vpop.f32.mrf.mxu0
    %v503 = vadd.f32 %v174, %v502
    %v504 = vpop.f32.mrf.mxu0
    %505 = vmatprep.mubr.f32.mxu0 0.0
    %506 = vmatmul.mubr.f32.gmra.mxu0 %v85
    %v507 = vpop.f32.mrf.mxu0
    %v508 = vadd.f32 %v174, %v507
    %v509 = vpop.f32.mrf.mxu0
    %510 = vmatprep.mubr.f32.mxu0 0.0
    %511 = vmatmul.mubr.f32.gmra.mxu0 %v86
    %v512 = vpop.f32.mrf.mxu0
    %v513 = vadd.f32 %v174, %v512
    %v514 = vpop.f32.mrf.mxu0
    %515 = vmatprep.mubr.f32.mxu0 0.0
    %516 = vmatmul.mubr.f32.gmra.mxu0 %v87
    %v517 = vpop.f32.mrf.mxu0
    %v518 = vadd.f32 %v174, %v517
    %v519 = vpop.f32.mrf.mxu0
    %520 = vmatprep.mubr.f32.mxu0 0.0
    %521 = vmatmul.mubr.f32.gmra.mxu0 %v88
    %v522 = vpop.f32.mrf.mxu0
    %v523 = vadd.f32 %v174, %v522
    %v524 = vpop.f32.mrf.mxu0
    %525 = vmatprep.mubr.f32.mxu0 0.0
    %526 = vmatmul.mubr.f32.gmra.mxu0 %v89
    %v527 = vpop.f32.mrf.mxu0
    %v528 = vadd.f32 %v174, %v527
    %v529 = vpop.f32.mrf.mxu0
    %530 = vmatprep.mubr.f32.mxu0 0.0
    %531 = vmatmul.mubr.f32.gmra.mxu0 %v90
    %v532 = vpop.f32.mrf.mxu0
    %v533 = vadd.f32 %v174, %v532
    %v534 = vpop.f32.mrf.mxu0
    %535 = vmatprep.mubr.f32.mxu0 0.0
    %536 = vmatmul.mubr.f32.gmra.mxu0 %v91
    %v537 = vpop.f32.mrf.mxu0
    %v538 = vadd.f32 %v174, %v537
    %v539 = vpop.f32.mrf.mxu0
    %540 = vmatprep.mubr.f32.mxu0 0.0
    %541 = vmatmul.mubr.f32.gmra.mxu0 %v92
    %v542 = vpop.f32.mrf.mxu0
    %v543 = vadd.f32 %v174, %v542
    %v544 = vpop.f32.mrf.mxu0
    %545 = vmatprep.mubr.f32.mxu0 0.0
    %546 = vmatmul.mubr.f32.gmra.mxu0 %v93
    %v547 = vpop.f32.mrf.mxu0
    %v548 = vadd.f32 %v174, %v547
    %v549 = vpop.f32.mrf.mxu0
    %550 = vmatprep.mubr.f32.mxu0 0.0
    %551 = vmatmul.mubr.f32.gmra.mxu0 %v94
    %v552 = vpop.f32.mrf.mxu0
    %v553 = vadd.f32 %v174, %v552
    %v554 = vpop.f32.mrf.mxu0
    %555 = vmatprep.mubr.f32.mxu0 0.0
    %556 = vmatmul.mubr.f32.gmra.mxu0 %v95
    %v557 = vpop.f32.mrf.mxu0
    %v558 = vadd.f32 %v174, %v557
    %v559 = vpop.f32.mrf.mxu0
    %560 = vmatprep.mubr.f32.mxu0 0.0
    %561 = vmatmul.mubr.f32.gmra.mxu0 %v96
    %v562 = vpop.f32.mrf.mxu0
    %v563 = vadd.f32 %v174, %v562
    %v564 = vpop.f32.mrf.mxu0
    %565 = vmatprep.mubr.f32.mxu0 0.0
    %566 = vmatmul.mubr.f32.gmra.mxu0 %v97
    %v567 = vpop.f32.mrf.mxu0
    %v568 = vadd.f32 %v174, %v567
    %v569 = vpop.f32.mrf.mxu0
    %570 = vmatprep.mubr.f32.mxu0 0.0
    %571 = vmatmul.mubr.f32.gmra.mxu0 %v98
    %v572 = vpop.f32.mrf.mxu0
    %v573 = vadd.f32 %v174, %v572
    %v574 = vpop.f32.mrf.mxu0
    %575 = vmatprep.mubr.f32.mxu0 0.0
    %576 = vmatmul.mubr.f32.gmra.mxu0 %v99
    %v577 = vpop.f32.mrf.mxu0
    %v578 = vadd.f32 %v174, %v577
    %v579 = vpop.f32.mrf.mxu0
    %580 = vmatprep.mubr.f32.mxu0 0.0
    %581 = vmatmul.mubr.f32.gmra.mxu0 %v100
    %v582 = vpop.f32.mrf.mxu0
    %v583 = vadd.f32 %v174, %v582
    %v584 = vpop.f32.mrf.mxu0
    %585 = vmatprep.mubr.f32.mxu0 0.0
    %586 = vmatmul.mubr.f32.gmra.mxu0 %v101
    %v587 = vpop.f32.mrf.mxu0
    %v588 = vadd.f32 %v174, %v587
    %v589 = vpop.f32.mrf.mxu0
    %590 = vmatprep.mubr.f32.mxu0 0.0
    %591 = vmatmul.mubr.f32.gmra.mxu0 %v102
    %v592 = vpop.f32.mrf.mxu0
    %v593 = vadd.f32 %v174, %v592
    %v594 = vpop.f32.mrf.mxu0
    %595 = vmatprep.mubr.f32.mxu0 0.0
    %596 = vmatmul.mubr.f32.gmra.mxu0 %v103
    %v597 = vpop.f32.mrf.mxu0
    %v598 = vadd.f32 %v174, %v597
    %v599 = vpop.f32.mrf.mxu0
    %600 = vmatprep.mubr.f32.mxu0 0.0
    %601 = vmatmul.mubr.f32.gmra.mxu0 %v104
    %v602 = vpop.f32.mrf.mxu0
    %v603 = vadd.f32 %v174, %v602
    %v604 = vpop.f32.mrf.mxu0
    %605 = vmatprep.mubr.f32.mxu0 0.0
    %606 = vmatmul.mubr.f32.gmra.mxu0 %v105
    %v607 = vpop.f32.mrf.mxu0
    %v608 = vadd.f32 %v174, %v607
    %v609 = vpop.f32.mrf.mxu0
    %610 = vmatprep.mubr.f32.mxu0 0.0
    %611 = vmatmul.mubr.f32.gmra.mxu0 %v106
    %v612 = vpop.f32.mrf.mxu0
    %v613 = vadd.f32 %v174, %v612
    %v614 = vpop.f32.mrf.mxu0
    %615 = vmatprep.mubr.f32.mxu0 0.0
    %616 = vmatmul.mubr.f32.gmra.mxu0 %v107
    %v617 = vpop.f32.mrf.mxu0
    %v618 = vadd.f32 %v174, %v617
    %v619 = vpop.f32.mrf.mxu0
    %620 = vmatprep.mubr.f32.mxu0 0.0
    %621 = vmatmul.mubr.f32.gmra.mxu0 %v108
    %v622 = vpop.f32.mrf.mxu0
    %v623 = vadd.f32 %v174, %v622
    %v624 = vpop.f32.mrf.mxu0
    %625 = vmatprep.mubr.f32.mxu0 0.0
    %626 = vmatmul.mubr.f32.gmra.mxu0 %v109
    %v627 = vpop.f32.mrf.mxu0
    %v628 = vadd.f32 %v174, %v627
    %v629 = vpop.f32.mrf.mxu0
    %630 = vmatprep.mubr.f32.mxu0 0.0
    %631 = vmatmul.mubr.f32.gmra.mxu0 %v110
    %v632 = vpop.f32.mrf.mxu0
    %v633 = vadd.f32 %v174, %v632
    %v634 = vpop.f32.mrf.mxu0
    %635 = vmatprep.mubr.f32.mxu0 0.0
    %636 = vmatmul.mubr.f32.gmra.mxu0 %v111
    %v637 = vpop.f32.mrf.mxu0
    %v638 = vadd.f32 %v174, %v637
    %v639 = vpop.f32.mrf.mxu0
    %640 = vmatprep.mubr.f32.mxu0 0.0
    %641 = vmatmul.mubr.f32.gmra.mxu0 %v112
    %v642 = vpop.f32.mrf.mxu0
    %v643 = vadd.f32 %v174, %v642
    %v644 = vpop.f32.mrf.mxu0
    %645 = vdwg.mxu0
    %646 = vmatprep.subr.mxu0 0.0
    %647 = vmatpush1.msra.mxu0 %v331
    %648 = vmatprep.subr.mxu0 0.0
    %649 = vmatpush1.msra.mxu0 %v326
    %650 = vmatprep.subr.mxu0 0.0
    %651 = vmatpush1.msra.mxu0 %v321
    %652 = vmatprep.subr.mxu0 0.0
    %653 = vmatpush1.msra.mxu0 %v316
    %654 = vmatprep.subr.mxu0 0.0
    %655 = vmatpush1.msra.mxu0 %v311
    %656 = vmatprep.subr.mxu0 0.0
    %657 = vmatpush1.msra.mxu0 %v306
    %658 = vmatprep.subr.mxu0 0.0
    %659 = vmatpush1.msra.mxu0 %v301
    %660 = vmatprep.subr.mxu0 0.0
    %661 = vmatpush1.msra.mxu0 %v296
    %662 = vmatprep.subr.mxu0 0.0
    %663 = vmatpush1.msra.mxu0 %v291
    %664 = vmatprep.subr.mxu0 0.0
    %665 = vmatpush1.msra.mxu0 %v286
    %666 = vmatprep.subr.mxu0 0.0
    %667 = vmatpush1.msra.mxu0 %v281
    %668 = vmatprep.subr.mxu0 0.0
    %669 = vmatpush1.msra.mxu0 %v276
    %670 = vmatprep.subr.mxu0 0.0
    %671 = vmatpush1.msra.mxu0 %v271
    %672 = vmatprep.subr.mxu0 0.0
    %673 = vmatpush1.msra.mxu0 %v266
    %674 = vmatprep.subr.mxu0 0.0
    %675 = vmatpush1.msra.mxu0 %v261
    %676 = vmatprep.subr.mxu0 0.0
    %677 = vmatpush1.msra.mxu0 %v256
    %678 = vmatprep.subr.mxu0 0.0
    %679 = vmatpush2.msra.mxu0 0.0
    %680 = vmatprep.subr.mxu0 0.0
    %681 = vmatpush2.msra.mxu0 0.0
    %682 = vmatprep.subr.mxu0 0.0
    %683 = vmatpush2.msra.mxu0 0.0
    %684 = vmatprep.subr.mxu0 0.0
    %685 = vmatpush2.msra.mxu0 0.0
    %686 = vmatprep.subr.mxu0 0.0
    %687 = vmatpush2.msra.mxu0 0.0
    %688 = vmatprep.subr.mxu0 0.0
    %689 = vmatpush2.msra.mxu0 0.0
    %690 = vmatprep.subr.mxu0 0.0
    %691 = vmatpush2.msra.mxu0 0.0
    %692 = vmatprep.subr.mxu0 0.0
    %693 = vmatpush2.msra.mxu0 0.0
    %694 = vmatprep.subr.mxu0 0.0
    %695 = vmatpush2.msra.mxu0 0.0
    %696 = vmatprep.subr.mxu0 0.0
    %697 = vmatpush2.msra.mxu0 0.0
    %698 = vmatprep.subr.mxu0 0.0
    %699 = vmatpush2.msra.mxu0 0.0
    %700 = vmatprep.subr.mxu0 0.0
    %701 = vmatpush2.msra.mxu0 0.0
    %702 = vmatprep.subr.mxu0 0.0
    %703 = vmatpush2.msra.mxu0 0.0
    %704 = vmatprep.subr.mxu0 0.0
    %705 = vmatpush2.msra.mxu0 0.0
    %706 = vmatprep.subr.mxu0 0.0
    %707 = vmatpush2.msra.mxu0 0.0
    %708 = vmatprep.subr.mxu0 0.0
    %709 = vmatpush2.msra.mxu0 0.0
    %710 = vmatprep.mubr.f32.mxu0 0.0
    %711 = vmatmul.mubr.f32.gmra.mxu0 %v245
    %v712 = vpop.f32.mrf.mxu0
    %v713 = vadd.f32 0.0, %v712
    %v714 = vpop.f32.mrf.mxu0
    %715 = vdwg.mxu0
    %716 = vmatprep.subr.mxu0 0.0
    %717 = vmatpush1.msra.mxu0 %v411
    %718 = vmatprep.subr.mxu0 0.0
    %719 = vmatpush1.msra.mxu0 %v406
    %720 = vmatprep.subr.mxu0 0.0
    %721 = vmatpush1.msra.mxu0 %v401
    %722 = vmatprep.subr.mxu0 0.0
    %723 = vmatpush1.msra.mxu0 %v396
    %724 = vmatprep.subr.mxu0 0.0
    %725 = vmatpush1.msra.mxu0 %v391
    %726 = vmatprep.subr.mxu0 0.0
    %727 = vmatpush1.msra.mxu0 %v386
    %728 = vmatprep.subr.mxu0 0.0
    %729 = vmatpush1.msra.mxu0 %v381
    %730 = vmatprep.subr.mxu0 0.0
    %731 = vmatpush1.msra.mxu0 %v376
    %732 = vmatprep.subr.mxu0 0.0
    %733 = vmatpush1.msra.mxu0 %v371
    %734 = vmatprep.subr.mxu0 0.0
    %735 = vmatpush1.msra.mxu0 %v366
    %736 = vmatprep.subr.mxu0 0.0
    %737 = vmatpush1.msra.mxu0 %v361
    %738 = vmatprep.subr.mxu0 0.0
    %739 = vmatpush1.msra.mxu0 %v356
    %740 = vmatprep.subr.mxu0 0.0
    %741 = vmatpush1.msra.mxu0 %v351
    %742 = vmatprep.subr.mxu0 0.0
    %743 = vmatpush1.msra.mxu0 %v346
    %744 = vmatprep.subr.mxu0 0.0
    %745 = vmatpush1.msra.mxu0 %v341
    %746 = vmatprep.subr.mxu0 0.0
    %747 = vmatpush1.msra.mxu0 %v336
    %748 = vmatprep.subr.mxu0 0.0
    %749 = vmatpush2.msra.mxu0 0.0
    %750 = vmatprep.subr.mxu0 0.0
    %751 = vmatpush2.msra.mxu0 0.0
    %752 = vmatprep.subr.mxu0 0.0
    %753 = vmatpush2.msra.mxu0 0.0
    %754 = vmatprep.subr.mxu0 0.0
    %755 = vmatpush2.msra.mxu0 0.0
    %756 = vmatprep.subr.mxu0 0.0
    %757 = vmatpush2.msra.mxu0 0.0
    %758 = vmatprep.subr.mxu0 0.0
    %759 = vmatpush2.msra.mxu0 0.0
    %760 = vmatprep.subr.mxu0 0.0
    %761 = vmatpush2.msra.mxu0 0.0
    %762 = vmatprep.subr.mxu0 0.0
    %763 = vmatpush2.msra.mxu0 0.0
    %764 = vmatprep.subr.mxu0 0.0
    %765 = vmatpush2.msra.mxu0 0.0
    %766 = vmatprep.subr.mxu0 0.0
    %767 = vmatpush2.msra.mxu0 0.0
    %768 = vmatprep.subr.mxu0 0.0
    %769 = vmatpush2.msra.mxu0 0.0
    %770 = vmatprep.subr.mxu0 0.0
    %771 = vmatpush2.msra.mxu0 0.0
    %772 = vmatprep.subr.mxu0 0.0
    %773 = vmatpush2.msra.mxu0 0.0
    %774 = vmatprep.subr.mxu0 0.0
    %775 = vmatpush2.msra.mxu0 0.0
    %776 = vmatprep.subr.mxu0 0.0
    %777 = vmatpush2.msra.mxu0 0.0
    %778 = vmatprep.subr.mxu0 0.0
    %779 = vmatpush2.msra.mxu0 0.0
    %780 = vmatprep.mubr.f32.mxu0 0.0
    %781 = vmatmul.mubr.f32.gmra.mxu0 %v250
    %v782 = vpop.f32.mrf.mxu0
    %v783 = vadd.f32 0.0, %v782
    %v784 = vpop.f32.mrf.mxu0
    %785 = vdwg.mxu0
    %786 = vmax.xlane.f32.xlu0 %v713
    %v787 = vpop.xlane.xlu0 %786
    %788 = vmax.xlane.f32.xlu0 %v783
    %v789 = vpop.xlane.xlu0 %788
    %v790 = vsub.f32 %v713, %v787
    %v791 = vsub.f32 %v783, %v789
    %v792 = vmul.f32 %v790, 1.442695
    %v793 = vpow.pop %v792
    %v794 = vmul.f32 %v791, 1.442695
    %v795 = vpow.pop %v794
    %796 = vadd.xlane.f32.xlu0 %v793
    %v797 = vpop.xlane.xlu0 %796
    %798 = vadd.xlane.f32.xlu0 %v795
    %v799 = vpop.xlane.xlu0 %798
    %v800 = vrcp.pop %v797
    %v801 = vmul.f32 %v793, %v800
    %v802 = vrcp.pop %v799
    %v803 = vmul.f32 %v795, %v802
    %804 = vmatprep.subr.mxu0 0.0
    %805 = vmatpush1.msra.mxu0 %v563
    %806 = vmatprep.subr.mxu0 0.0
    %807 = vmatpush1.msra.mxu0 %v558
    %808 = vmatprep.subr.mxu0 0.0
    %809 = vmatpush1.msra.mxu0 %v553
    %810 = vmatprep.subr.mxu0 0.0
    %811 = vmatpush1.msra.mxu0 %v548
    %812 = vmatprep.subr.mxu0 0.0
    %813 = vmatpush1.msra.mxu0 %v543
    %814 = vmatprep.subr.mxu0 0.0
    %815 = vmatpush1.msra.mxu0 %v538
    %816 = vmatprep.subr.mxu0 0.0
    %817 = vmatpush1.msra.mxu0 %v533
    %818 = vmatprep.subr.mxu0 0.0
    %819 = vmatpush1.msra.mxu0 %v528
    %820 = vmatprep.subr.mxu0 0.0
    %821 = vmatpush1.msra.mxu0 %v523
    %822 = vmatprep.subr.mxu0 0.0
    %823 = vmatpush1.msra.mxu0 %v518
    %824 = vmatprep.subr.mxu0 0.0
    %825 = vmatpush1.msra.mxu0 %v513
    %826 = vmatprep.subr.mxu0 0.0
    %827 = vmatpush1.msra.mxu0 %v508
    %828 = vmatprep.subr.mxu0 0.0
    %829 = vmatpush1.msra.mxu0 %v503
    %830 = vmatprep.subr.mxu0 0.0
    %831 = vmatpush1.msra.mxu0 %v498
    %832 = vmatprep.subr.mxu0 0.0
    %833 = vmatpush1.msra.mxu0 %v493
    %834 = vmatprep.subr.mxu0 0.0
    %835 = vmatpush1.msra.mxu0 %v488
    %836 = vmatprep.subr.mxu0 0.0
    %837 = vmatpush2.msra.mxu0 0.0
    %838 = vmatprep.subr.mxu0 0.0
    %839 = vmatpush2.msra.mxu0 0.0
    %840 = vmatprep.subr.mxu0 0.0
    %841 = vmatpush2.msra.mxu0 0.0
    %842 = vmatprep.subr.mxu0 0.0
    %843 = vmatpush2.msra.mxu0 0.0
    %844 = vmatprep.subr.mxu0 0.0
    %845 = vmatpush2.msra.mxu0 0.0
    %846 = vmatprep.subr.mxu0 0.0
    %847 = vmatpush2.msra.mxu0 0.0
    %848 = vmatprep.subr.mxu0 0.0
    %849 = vmatpush2.msra.mxu0 0.0
    %850 = vmatprep.subr.mxu0 0.0
    %851 = vmatpush2.msra.mxu0 0.0
    %852 = vmatprep.subr.mxu0 0.0
    %853 = vmatpush2.msra.mxu0 0.0
    %854 = vmatprep.subr.mxu0 0.0
    %855 = vmatpush2.msra.mxu0 0.0
    %856 = vmatprep.subr.mxu0 0.0
    %857 = vmatpush2.msra.mxu0 0.0
    %858 = vmatprep.subr.mxu0 0.0
    %859 = vmatpush2.msra.mxu0 0.0
    %860 = vmatprep.subr.mxu0 0.0
    %861 = vmatpush2.msra.mxu0 0.0
    %862 = vmatprep.subr.mxu0 0.0
    %863 = vmatpush2.msra.mxu0 0.0
    %864 = vmatprep.subr.mxu0 0.0
    %865 = vmatpush2.msra.mxu0 0.0
    %866 = vmatprep.subr.mxu0 0.0
    %867 = vmatpush2.msra.mxu0 0.0
    %868 = vmatprep.mubr.f32.mxu0 0.0
    %869 = vmatmul.mubr.f32.gmra.mxu0 %v801
    %v870 = vpop.f32.mrf.mxu0
    %v871 = vadd.f32 0.0, %v870
    %v872 = vpop.f32.mrf.mxu0
    %873 = vdwg.mxu0
    %874 = vmatprep.subr.mxu0 0.0
    %875 = vmatpush1.msra.mxu0 %v643
    %876 = vmatprep.subr.mxu0 0.0
    %877 = vmatpush1.msra.mxu0 %v638
    %878 = vmatprep.subr.mxu0 0.0
    %879 = vmatpush1.msra.mxu0 %v633
    %880 = vmatprep.subr.mxu0 0.0
    %881 = vmatpush1.msra.mxu0 %v628
    %882 = vmatprep.subr.mxu0 0.0
    %883 = vmatpush1.msra.mxu0 %v623
    %884 = vmatprep.subr.mxu0 0.0
    %885 = vmatpush1.msra.mxu0 %v618
    %886 = vmatprep.subr.mxu0 0.0
    %887 = vmatpush1.msra.mxu0 %v613
    %888 = vmatprep.subr.mxu0 0.0
    %889 = vmatpush1.msra.mxu0 %v608
    %890 = vmatprep.subr.mxu0 0.0
    %891 = vmatpush1.msra.mxu0 %v603
    %892 = vmatprep.subr.mxu0 0.0
    %893 = vmatpush1.msra.mxu0 %v598
    %894 = vmatprep.subr.mxu0 0.0
    %895 = vmatpush1.msra.mxu0 %v593
    %896 = vmatprep.subr.mxu0 0.0
    %897 = vmatpush1.msra.mxu0 %v588
    %898 = vmatprep.subr.mxu0 0.0
    %899 = vmatpush1.msra.mxu0 %v583
    %900 = vmatprep.subr.mxu0 0.0
    %901 = vmatpush1.msra.mxu0 %v578
    %902 = vmatprep.subr.mxu0 0.0
    %903 = vmatpush1.msra.mxu0 %v573
    %904 = vmatprep.subr.mxu0 0.0
    %905 = vmatpush1.msra.mxu0 %v568
    %906 = vmatprep.subr.mxu0 0.0
    %907 = vmatpush2.msra.mxu0 0.0
    %908 = vmatprep.subr.mxu0 0.0
    %909 = vmatpush2.msra.mxu0 0.0
    %910 = vmatprep.subr.mxu0 0.0
    %911 = vmatpush2.msra.mxu0 0.0
    %912 = vmatprep.subr.mxu0 0.0
    %913 = vmatpush2.msra.mxu0 0.0
    %914 = vmatprep.subr.mxu0 0.0
    %915 = vmatpush2.msra.mxu0 0.0
    %916 = vmatprep.subr.mxu0 0.0
    %917 = vmatpush2.msra.mxu0 0.0
    %918 = vmatprep.subr.mxu0 0.0
    %919 = vmatpush2.msra.mxu0 0.0
    %920 = vmatprep.subr.mxu0 0.0
    %921 = vmatpush2.msra.mxu0 0.0
    %922 = vmatprep.subr.mxu0 0.0
    %923 = vmatpush2.msra.mxu0 0.0
    %924 = vmatprep.subr.mxu0 0.0
    %925 = vmatpush2.msra.mxu0 0.0
    %926 = vmatprep.subr.mxu0 0.0
    %927 = vmatpush2.msra.mxu0 0.0
    %928 = vmatprep.subr.mxu0 0.0
    %929 = vmatpush2.msra.mxu0 0.0
    %930 = vmatprep.subr.mxu0 0.0
    %931 = vmatpush2.msra.mxu0 0.0
    %932 = vmatprep.subr.mxu0 0.0
    %933 = vmatpush2.msra.mxu0 0.0
    %934 = vmatprep.subr.mxu0 0.0
    %935 = vmatpush2.msra.mxu0 0.0
    %936 = vmatprep.subr.mxu0 0.0
    %937 = vmatpush2.msra.mxu0 0.0
    %938 = vmatprep.mubr.f32.mxu0 0.0
    %939 = vmatmul.mubr.f32.gmra.mxu0 %v803
    %v940 = vpop.f32.mrf.mxu0
    %v941 = vadd.f32 0.0, %v940
    %v942 = vpop.f32.mrf.mxu0
    %943 = vdwg.mxu0
    %v944 = vld [vmem:[#allocation8] sm:$0xff]
    %v945 = vld [vmem:[#allocation8 + $0x8] sm:$0xff]
    %v946 = vld [vmem:[#allocation8 + $0x10] sm:$0xff]
    %v947 = vld [vmem:[#allocation8 + $0x18] sm:$0xff]
    %v948 = vld [vmem:[#allocation8 + $0x20] sm:$0xff]
    %v949 = vld [vmem:[#allocation8 + $0x28] sm:$0xff]
    %v950 = vld [vmem:[#allocation8 + $0x30] sm:$0xff]
    %v951 = vld [vmem:[#allocation8 + $0x38] sm:$0xff]
    %v952 = vld [vmem:[#allocation8 + $0x40] sm:$0xff]
    %v953 = vld [vmem:[#allocation8 + $0x48] sm:$0xff]
    %v954 = vld [vmem:[#allocation8 + $0x50] sm:$0xff]
    %v955 = vld [vmem:[#allocation8 + $0x58] sm:$0xff]
    %v956 = vld [vmem:[#allocation8 + $0x60] sm:$0xff]
    %v957 = vld [vmem:[#allocation8 + $0x68] sm:$0xff]
    %v958 = vld [vmem:[#allocation8 + $0x70] sm:$0xff]
    %v959 = vld [vmem:[#allocation8 + $0x78] sm:$0xff]
    %v960 = vld [vmem:[%s5] sm:$0x1]
    %v962 = vlaneseq
    %v963 = vshrl.u32 %v962, 7
    %v964 = vsub.s32 0, %v963
    %v965 = vrot.slane %v960, %v964
    %967 = vmatprep.subr.mxu0 0.0
    %968 = vmatpush1.msra.mxu0 %v959
    %969 = vmatprep.subr.mxu0 0.0
    %970 = vmatpush1.msra.mxu0 %v958
    %971 = vmatprep.subr.mxu0 0.0
    %972 = vmatpush1.msra.mxu0 %v957
    %973 = vmatprep.subr.mxu0 0.0
    %974 = vmatpush1.msra.mxu0 %v956
    %975 = vmatprep.subr.mxu0 0.0
    %976 = vmatpush1.msra.mxu0 %v955
    %977 = vmatprep.subr.mxu0 0.0
    %978 = vmatpush1.msra.mxu0 %v954
    %979 = vmatprep.subr.mxu0 0.0
    %980 = vmatpush1.msra.mxu0 %v953
    %981 = vmatprep.subr.mxu0 0.0
    %982 = vmatpush1.msra.mxu0 %v952
    %983 = vmatprep.subr.mxu0 0.0
    %984 = vmatpush1.msra.mxu0 %v951
    %985 = vmatprep.subr.mxu0 0.0
    %986 = vmatpush1.msra.mxu0 %v950
    %987 = vmatprep.subr.mxu0 0.0
    %988 = vmatpush1.msra.mxu0 %v949
    %989 = vmatprep.subr.mxu0 0.0
    %990 = vmatpush1.msra.mxu0 %v948
    %991 = vmatprep.subr.mxu0 0.0
    %992 = vmatpush1.msra.mxu0 %v947
    %993 = vmatprep.subr.mxu0 0.0
    %994 = vmatpush1.msra.mxu0 %v946
    %995 = vmatprep.subr.mxu0 0.0
    %996 = vmatpush1.msra.mxu0 %v945
    %997 = vmatprep.subr.mxu0 0.0
    %998 = vmatpush1.msra.mxu0 %v944
    %999 = vmatprep.subr.mxu0 0.0
    %1000 = vmatpush2.msra.mxu0 0.0
    %1001 = vmatprep.subr.mxu0 0.0
    %1002 = vmatpush2.msra.mxu0 0.0
    %1003 = vmatprep.subr.mxu0 0.0
    %1004 = vmatpush2.msra.mxu0 0.0
    %1005 = vmatprep.subr.mxu0 0.0
    %1006 = vmatpush2.msra.mxu0 0.0
    %1007 = vmatprep.subr.mxu0 0.0
    %1008 = vmatpush2.msra.mxu0 0.0
    %1009 = vmatprep.subr.mxu0 0.0
    %1010 = vmatpush2.msra.mxu0 0.0
    %1011 = vmatprep.subr.mxu0 0.0
    %1012 = vmatpush2.msra.mxu0 0.0
    %1013 = vmatprep.subr.mxu0 0.0
    %1014 = vmatpush2.msra.mxu0 0.0
    %1015 = vmatprep.subr.mxu0 0.0
    %1016 = vmatpush2.msra.mxu0 0.0
    %1017 = vmatprep.subr.mxu0 0.0
    %1018 = vmatpush2.msra.mxu0 0.0
    %1019 = vmatprep.subr.mxu0 0.0
    %1020 = vmatpush2.msra.mxu0 0.0
    %1021 = vmatprep.subr.mxu0 0.0
    %1022 = vmatpush2.msra.mxu0 0.0
    %1023 = vmatprep.subr.mxu0 0.0
    %1024 = vmatpush2.msra.mxu0 0.0
    %1025 = vmatprep.subr.mxu0 0.0
    %1026 = vmatpush2.msra.mxu0 0.0
    %1027 = vmatprep.subr.mxu0 0.0
    %1028 = vmatpush2.msra.mxu0 0.0
    %1029 = vmatprep.subr.mxu0 0.0
    %1030 = vmatpush2.msra.mxu0 0.0
    %1031 = vmatprep.mubr.f32.mxu0 0.0
    %1032 = vmatmul.mubr.f32.gmra.mxu0 %v871
    %v1033 = vpop.f32.mrf.mxu0
    %v1034 = vadd.f32 %v965, %v1033
    %v1035 = vpop.f32.mrf.mxu0
    %1036 = vmatprep.mubr.f32.mxu0 0.0
    %1037 = vmatmul.mubr.f32.gmra.mxu0 %v941
    %v1038 = vpop.f32.mrf.mxu0
    %v1039 = vadd.f32 %v965, %v1038
    %v1040 = vpop.f32.mrf.mxu0
    %1041 = vdwg.mxu0
    %1042 = vst [vmem:[#allocation10] sm:$0xff] %v1034
    %1043 = vst [vmem:[#allocation10 + $0x8] sm:$0xff] %v1039
    // Predicated region
    $region42: #{tpu_custom_call.1} parent=1 // pred_check
      _
    $region43: #{tpu_custom_call.1} parent=1 // pred_check_branch
      %1045 = sbr.rel (0) target = $region45
    $region44: #{tpu_custom_call.1} parent=1 // pred_region
      %s1047 = ssub.s32 256, 256
      %1048 = vsyncadd [#allocation4], %s1047
      %s1049 = sshll.u32 [#allocation10], 4
      %s1050 = int_to_ptr.vmem [resolvable:$true] %s1049
      %1055 = dma.vmem_to_hbm [thread:$0]  %s1050, 256, %s6, [#allocation4], 128, 128, 8
    $region45: #{tpu_custom_call.1} parent=1 // pred_fallthru
      _
    // Predicated region
    $region46: #{tpu_custom_call.1} parent=1 // pred_check
      _
    $region47: #{tpu_custom_call.1} parent=1 // pred_check_branch
      %1057 = sbr.rel (0) target = $region49
    $region48: #{tpu_custom_call.1} parent=1 // pred_region
      %1058 = dma.done [#allocation4], 256
    $region49: #{tpu_custom_call.1} parent=1 // pred_fallthru
      _
    %1059 = vsyncpa [#allocation3], 1
    %1060 = vsyncpa [#allocation6], 1
    %1061 = vsyncpa [#allocation9], 1
    %1062 = vsyncpa [#allocation4], 1

</llo_original>
